<compile_context>
chip_gen: v6e
topology: v6e:2x2x1
jax: 0.10.0
libtpu: 0.0.40
codegen_flags: <defaults>
</compile_context>

<pallas_src>
import functools

import jax
import jax.numpy as jnp
from jax.experimental import pallas as pl

# Set to jnp.bfloat16 on v6e/v7x for production shapes (f32 MXU operands are decomposed into
# multiple bf16 passes). Kept f32 here so the strict 1e-4 check vs. the f32 reference passes.
MXU_DTYPE = jnp.float32


def _rup8(n):
    return ((n + 7) // 8) * 8


def lstm_layout(I, H):
    """Row offsets (8-aligned block starts) of the packed LSTM slab, width = 4H."""
    off = {}
    r = 0
    off["w_ih"] = r; r = _rup8(r + I)
    off["w_hh"] = r; r = _rup8(r + H)
    off["b"] = r;    r = _rup8(r + 1)
    return off, r


def head_layout(H, FC1, FC2, NC):
    """Row offsets (8-aligned block starts) of the packed attention+MLP slab, width = FC1."""
    off = {}
    r = 0
    off["wa"] = r;  r = _rup8(r + 1)
    off["w1c"] = r; r = _rup8(r + H)
    off["b1"] = r;  r = _rup8(r + 1)
    off["w2"] = r;  r = _rup8(r + FC1)
    off["b2"] = r;  r = _rup8(r + 1)
    off["w3"] = r;  r = _rup8(r + FC2)
    off["b3"] = r;  r = _rup8(r + 1)
    return off, r


def _mm(a, b):
    # bf16 MXU operands on v6e/v7x via MXU_DTYPE; always f32 accumulation.
    return jnp.dot(a.astype(MXU_DTYPE), b.astype(MXU_DTYPE),
                   preferred_element_type=jnp.float32)


# ------------------ fused LSTM + attention + MLP head kernel -----------------
# x_ref is time-major, flattened and batch-padded: row r = t*B_pad + b, shape (T*B_pad, I).
# Gate order i, f, g, o (PyTorch convention); bias = b_ih + b_hh.
# Zero-image branch: fc1([fb, fa, ctx]) == ctx @ w1c + b1 exactly (fb = fa = 0).
def fused_forward_kernel(T, B, I, H, FC1, FC2, NC,
                         x_ref, lstm_ref, head_ref, out_ref):
    l_off, _ = lstm_layout(I, H)
    h_off, _ = head_layout(H, FC1, FC2, NC)

    w_ih = lstm_ref[l_off["w_ih"]:l_off["w_ih"] + I, :]        # (I, 4H)
    w_hh = lstm_ref[l_off["w_hh"]:l_off["w_hh"] + H, :]        # (H, 4H)
    b    = lstm_ref[l_off["b"]:l_off["b"] + 1, :]              # (1, 4H)

    # Hoisted input projection for the whole sequence: one MXU call with M = T*B_pad.
    x = x_ref[...]                                             # (T*B, I)
    gx = _mm(x, w_ih) + b                                      # (T*B, 4H)
    gx3 = gx.reshape(T, B, 4 * H)                              # free: (8,128)-tile preserving

    h = jnp.zeros((B, H), jnp.float32)
    c = jnp.zeros((B, H), jnp.float32)
    hs = []
    for t in range(T):                                         # static unroll; 1 matmul / step
        gates = gx3[t] + _mm(h, w_hh)                          # (B, 4H) == one f32 vreg
        sg = jax.nn.sigmoid(gates)                             # full-vreg EUP push
        tg = jnp.tanh(gates)                                   # full-vreg EUP push
        i_g = sg[:, 0 * H:1 * H]
        f_g = sg[:, 1 * H:2 * H]
        g_g = tg[:, 2 * H:3 * H]
        o_g = sg[:, 3 * H:4 * H]
        c = f_g * c + i_g * g_g                                # elementwise stays f32 (v5e)
        h = o_g * jnp.tanh(c)
        hs.append(h)

    # Attention over time, vectorized over the stacked hidden states.
    # `ba` is omitted: softmax over t is shift-invariant, so the result is unchanged.
    hs3 = jnp.stack(hs, axis=0)                                # (T, B, H)
    wa = head_ref[h_off["wa"]:h_off["wa"] + 1, 0:H]            # (1, H)
    scores = jnp.sum(hs3 * wa, axis=-1, keepdims=True)         # (T, B, 1) — one lane reduce
    m = jnp.max(scores, axis=0, keepdims=True)                 # (1, B, 1)
    e = jnp.exp(scores - m)                                    # (T, B, 1)
    denom = jnp.sum(e, axis=0)                                 # (B, 1)
    num = jnp.sum(e * hs3, axis=0)                             # (B, H)
    ctx = num / denom                                          # (B, H) == sum_t softmax_t * h_t

    # MLP head (zero-image branch: the fb/fa matmuls of fc1 are dropped exactly).
    w1c = head_ref[h_off["w1c"]:h_off["w1c"] + H, :]           # (H, FC1)
    b1  = head_ref[h_off["b1"]:h_off["b1"] + 1, :]             # (1, FC1)
    w2  = head_ref[h_off["w2"]:h_off["w2"] + FC1, 0:FC2]       # (FC1, FC2)
    b2  = head_ref[h_off["b2"]:h_off["b2"] + 1, 0:FC2]         # (1, FC2)
    w3  = head_ref[h_off["w3"]:h_off["w3"] + FC2, 0:NC]        # (FC2, NC)
    b3  = head_ref[h_off["b3"]:h_off["b3"] + 1, 0:NC]          # (1, NC)

    y = jnp.maximum(_mm(ctx, w1c) + b1, 0.0)                   # ReLU only after fc1 (as in spec)
    y = _mm(y, w2) + b2
    y = _mm(y, w3) + b3
    out_ref[...] = y


def combined_forward_pallas(x_tm_flat, packed, T, B_pad):
    d = packed["dims"]
    kernel = functools.partial(fused_forward_kernel, T, B_pad,
                               d["I"], d["H"], d["FC1"], d["FC2"], d["NC"])
    return pl.pallas_call(
        kernel,
        out_shape=jax.ShapeDtypeStruct((B_pad, d["NC"]), jnp.float32),
    )(x_tm_flat, packed["lstm_slab"], packed["head_slab"])


# --------------------------- parameter packing ------------------------------
def pack_params(params):
    """Pack the 11 weight/bias arrays into 2 sublane-aligned slabs (done once, off the hot path)."""
    I = params["w_ih"].shape[0]
    H = params["w_hh"].shape[0]
    FC1 = params["w1c"].shape[1]
    FC2 = params["w2"].shape[1]
    NC = params["w3"].shape[1]

    l_off, l_rows = lstm_layout(I, H)
    lstm_slab = jnp.zeros((l_rows, 4 * H), jnp.float32)
    lstm_slab = lstm_slab.at[l_off["w_ih"]:l_off["w_ih"] + I].set(params["w_ih"])
    lstm_slab = lstm_slab.at[l_off["w_hh"]:l_off["w_hh"] + H].set(params["w_hh"])
    lstm_slab = lstm_slab.at[l_off["b"]:l_off["b"] + 1].set(params["b_lstm"])

    h_off, h_rows = head_layout(H, FC1, FC2, NC)
    head_slab = jnp.zeros((h_rows, FC1), jnp.float32)
    head_slab = head_slab.at[h_off["wa"], :H].set(params["wa"][0])
    head_slab = head_slab.at[h_off["w1c"]:h_off["w1c"] + H].set(params["w1c"])
    head_slab = head_slab.at[h_off["b1"]].set(params["b1"][0])
    head_slab = head_slab.at[h_off["w2"]:h_off["w2"] + FC1, :FC2].set(params["w2"])
    head_slab = head_slab.at[h_off["b2"], :FC2].set(params["b2"][0])
    head_slab = head_slab.at[h_off["w3"]:h_off["w3"] + FC2, :NC].set(params["w3"])
    head_slab = head_slab.at[h_off["b3"], :NC].set(params["b3"][0])
    # Note: `ba` is intentionally not packed (softmax shift-invariance makes it a no-op).

    return {
        "lstm_slab": lstm_slab,
        "head_slab": head_slab,
        "dims": dict(I=I, H=H, FC1=FC1, FC2=FC2, NC=NC),
    }


# --------------------------- full forward (glue) ----------------------------
def combined_model_forward(packed, heat_treatment_parameters,
                           image_before=None, image_after=None):
    if image_before is not None and image_after is not None:
        # TODO(synk): pretrained ResNet50 backbone not implemented (checkpoint-dependent);
        # with real features the full [fb | fa | ctx] fc1 (w1b/w1a) would be required, and
        # its 2048-wide tiles must be re-derived for v7x's 64 MiB/TC VMEM.
        raise NotImplementedError("ResNet50 image branch not implemented; pass None images")

    I = packed["dims"]["I"]
    x = heat_treatment_parameters
    # Shape-normalization branches mirroring the PyTorch module.
    if x.ndim == 2:
        x = jnp.transpose(x[:, :, None], (0, 2, 1))          # (B, 1, T_orig)
    elif x.ndim == 3:
        if x.shape[-1] == I:
            pass                                             # already (B, T, I)
        elif x.shape[-2] == I:
            x = jnp.transpose(x, (0, 2, 1))
        else:
            raise ValueError(f"Expected input size {I}, got {x.shape[-1]}")
    else:
        raise ValueError(f"Expected 2 or 3 dimensions, got {x.ndim}")
    if x.shape[-1] != I:                                     # guards the 2-D path too
        raise ValueError(f"Expected input size {I}, got {x.shape[-1]}")

    x = x.astype(jnp.float32)
    B, T, _ = x.shape

    # Time-major, batch padded to one full sublane tile (>= 8): row r = t*B_pad + b.
    B_pad = max(8, _rup8(B))
    x_tm = jnp.transpose(x, (1, 0, 2))                        # (T, B, I)
    if B_pad != B:
        x_tm = jnp.pad(x_tm, ((0, 0), (0, B_pad - B), (0, 0)))
    x_tm_flat = x_tm.reshape(T * B_pad, I)

    out = combined_forward_pallas(x_tm_flat, packed, T, B_pad)
    return out[:B]


# ------------------------------ pure-JAX ref --------------------------------
def reference_forward(params, x_bti):
    B, T, _ = x_bti.shape
    H = params["w_hh"].shape[0]

    def step(carry, x_t):
        h, c = carry
        gates = x_t @ params["w_ih"] + h @ params["w_hh"] + params["b_lstm"][0]
        i = jax.nn.sigmoid(gates[:, :H])
        f = jax.nn.sigmoid(gates[:, H:2 * H])
        g = jnp.tanh(gates[:, 2 * H:3 * H])
        o = jax.nn.sigmoid(gates[:, 3 * H:])
        c = f * c + i * g
        h = o * jnp.tanh(c)
        return (h, c), h

    (_, _), ys = jax.lax.scan(step,
                              (jnp.zeros((B, H)), jnp.zeros((B, H))),
                              jnp.transpose(x_bti, (1, 0, 2)))
    lo = jnp.transpose(ys, (1, 0, 2))                        # (B, T, H)
    scores = jnp.einsum('bth,h->bt', lo, params["wa"][0]) + params["ba"][0, 0]
    attn = jax.nn.softmax(scores, axis=1)                    # softmax over time
    ctx = jnp.einsum('bt,bth->bh', attn, lo)
    fb = jnp.zeros((B, 2048))
    fa = jnp.zeros((B, 2048))
    # Full fc1 with zero image features — demonstrates the kernel's skip is exact.
    x = jnp.maximum(fb @ params["w1b"] + fa @ params["w1a"] + ctx @ params["w1c"]
                    + params["b1"], 0.0)
    x = x @ params["w2"] + params["b2"]
    x = x @ params["w3"] + params["b3"]
    return x


# --------------------------------- main --------------------------------------
if __name__ == "__main__":
    # Small, forward-consistent shapes.
    B, T, I, H = 2, 8, 4, 32           # batch, seq, input_size, hidden_size
    FC1, FC2, NC = 64, 32, 8           # fc1_neurons, fc2_neurons, num_classes
    FC1_IN = 2048 * 2 + H

    key = jax.random.PRNGKey(0)
    ks = jax.random.split(key, 16)

    def u(k, shape, fan_in):
        bound = 1.0 / jnp.sqrt(jnp.float32(fan_in))
        return jax.random.uniform(k, shape, jnp.float32, -bound, bound)

    params = {
        # LSTM (gate order i,f,g,o), stored as x @ W layouts; bias = b_ih + b_hh.
        "w_ih": u(ks[0], (I, 4 * H), H),
        "w_hh": u(ks[1], (H, 4 * H), H),
        "b_lstm": u(ks[2], (1, 4 * H), H) + u(ks[3], (1, 4 * H), H),
        # Attention: Linear(H, 1)
        "wa": u(ks[4], (1, H), H),
        "ba": u(ks[5], (1, 1), H),
        # fc1 split into [features_before | features_after | context] blocks.
        # w1b / w1a feed the reference only; the kernel skips them in the zero-image branch.
        "w1b": u(ks[6], (2048, FC1), FC1_IN),
        "w1a": u(ks[7], (2048, FC1), FC1_IN),
        "w1c": u(ks[8], (H, FC1), FC1_IN),
        "b1": u(ks[9], (1, FC1), FC1_IN),
        "w2": u(ks[10], (FC1, FC2), FC1),
        "b2": u(ks[11], (1, FC2), FC1),
        "w3": u(ks[12], (FC2, NC), FC2),
        "b3": u(ks[13], (1, NC), FC2),
    }

    heat_treatment_parameters = jax.random.normal(ks[14], (B, T, I), jnp.float32)

    packed = pack_params(params)                             # one-time slab packing
    out = combined_model_forward(packed, heat_treatment_parameters)
    out = jax.block_until_ready(out)

    ref = reference_forward(params, heat_treatment_parameters)
    assert out.shape == (B, NC), out.shape
    assert jnp.allclose(out, ref, atol=1e-4, rtol=1e-4), (out, ref)

    print("KERNEL_OK")
</pallas_src>

<mosaic_0001>
module attributes {stable_mosaic.version = 11 : i64} {
  func.func @fused_forward_kernel(%arg0: memref<64x4xf32, #tpu.memory_space<vmem>>, %arg1: memref<48x128xf32, #tpu.memory_space<vmem>>, %arg2: memref<160x64xf32, #tpu.memory_space<vmem>>, %arg3: memref<8x8xf32, #tpu.memory_space<vmem>>) attributes {dimension_semantics = [], scalar_prefetch = 0 : i64, scratch_operands = 0 : i64, tpu.core_type = #tpu.core_type<tc>} {
    %c0 = arith.constant 0 : index
    %c0_0 = arith.constant 0 : index
    %0 = vector.load %arg1[%c0, %c0_0] : memref<48x128xf32, #tpu.memory_space<vmem>>, vector<4x128xf32>
    %c8 = arith.constant 8 : index
    %c0_1 = arith.constant 0 : index
    %1 = vector.load %arg1[%c8, %c0_1] : memref<48x128xf32, #tpu.memory_space<vmem>>, vector<32x128xf32>
    %c40 = arith.constant 40 : index
    %c0_2 = arith.constant 0 : index
    %2 = vector.load %arg1[%c40, %c0_2] : memref<48x128xf32, #tpu.memory_space<vmem>>, vector<1x128xf32>
    %c0_3 = arith.constant 0 : index
    %c0_4 = arith.constant 0 : index
    %3 = vector.load %arg0[%c0_3, %c0_4] : memref<64x4xf32, #tpu.memory_space<vmem>>, vector<64x4xf32>
    %cst = arith.constant dense<0.000000e+00> : vector<64x128xf32>
    %4 = tpu.matmul %3, %0, %cst {dimension_numbers = #tpu.dot_dimension_numbers<[1], [0], [0], [1], [0, 0, 1, 1], [], []>} : vector<64x4xf32>, vector<4x128xf32>, vector<64x128xf32> -> vector<64x128xf32>
    %5 = vector.broadcast %2 : vector<1x128xf32> to vector<64x128xf32>
    %6 = arith.addf %4, %5 : vector<64x128xf32>
    %7 = vector.shape_cast %6 : vector<64x128xf32> to vector<8x8x128xf32>
    %cst_5 = arith.constant 0.000000e+00 : f32
    %8 = vector.broadcast %cst_5 : f32 to vector<8x32xf32>
    %cst_6 = arith.constant 0.000000e+00 : f32
    %9 = vector.broadcast %cst_6 : f32 to vector<8x32xf32>
    %10 = vector.extract_strided_slice %7 {offsets = [0, 0, 0], sizes = [1, 8, 128], strides = [1, 1, 1]} : vector<8x8x128xf32> to vector<1x8x128xf32>
    %11 = vector.shape_cast %10 : vector<1x8x128xf32> to vector<8x128xf32>
    %cst_7 = arith.constant dense<0.000000e+00> : vector<8x128xf32>
    %12 = tpu.matmul %8, %1, %cst_7 {dimension_numbers = #tpu.dot_dimension_numbers<[1], [0], [0], [1], [0, 0, 1, 1], [], []>} : vector<8x32xf32>, vector<32x128xf32>, vector<8x128xf32> -> vector<8x128xf32>
    %13 = arith.addf %11, %12 : vector<8x128xf32>
    %14 = arith.negf %13 : vector<8x128xf32>
    %15 = math.exp %14 : vector<8x128xf32>
    %cst_8 = arith.constant 1.000000e+00 : f32
    %16 = vector.broadcast %cst_8 : f32 to vector<8x128xf32>
    %17 = arith.addf %16, %15 : vector<8x128xf32>
    %18 = arith.divf %16, %17 : vector<8x128xf32>
    %19 = math.tanh %13 : vector<8x128xf32>
    %20 = vector.extract_strided_slice %18 {offsets = [0, 0], sizes = [8, 32], strides = [1, 1]} : vector<8x128xf32> to vector<8x32xf32>
    %21 = vector.extract_strided_slice %18 {offsets = [0, 32], sizes = [8, 32], strides = [1, 1]} : vector<8x128xf32> to vector<8x32xf32>
    %22 = vector.extract_strided_slice %19 {offsets = [0, 64], sizes = [8, 32], strides = [1, 1]} : vector<8x128xf32> to vector<8x32xf32>
    %23 = vector.extract_strided_slice %18 {offsets = [0, 96], sizes = [8, 32], strides = [1, 1]} : vector<8x128xf32> to vector<8x32xf32>
    %24 = arith.mulf %21, %9 : vector<8x32xf32>
    %25 = arith.mulf %20, %22 : vector<8x32xf32>
    %26 = arith.addf %24, %25 : vector<8x32xf32>
    %27 = math.tanh %26 : vector<8x32xf32>
    %28 = arith.mulf %23, %27 : vector<8x32xf32>
    %29 = vector.extract_strided_slice %7 {offsets = [1, 0, 0], sizes = [1, 8, 128], strides = [1, 1, 1]} : vector<8x8x128xf32> to vector<1x8x128xf32>
    %30 = vector.shape_cast %29 : vector<1x8x128xf32> to vector<8x128xf32>
    %cst_9 = arith.constant dense<0.000000e+00> : vector<8x128xf32>
    %31 = tpu.matmul %28, %1, %cst_9 {dimension_numbers = #tpu.dot_dimension_numbers<[1], [0], [0], [1], [0, 0, 1, 1], [], []>} : vector<8x32xf32>, vector<32x128xf32>, vector<8x128xf32> -> vector<8x128xf32>
    %32 = arith.addf %30, %31 : vector<8x128xf32>
    %33 = arith.negf %32 : vector<8x128xf32>
    %34 = math.exp %33 : vector<8x128xf32>
    %cst_10 = arith.constant 1.000000e+00 : f32
    %35 = vector.broadcast %cst_10 : f32 to vector<8x128xf32>
    %36 = arith.addf %35, %34 : vector<8x128xf32>
    %37 = arith.divf %35, %36 : vector<8x128xf32>
    %38 = math.tanh %32 : vector<8x128xf32>
    %39 = vector.extract_strided_slice %37 {offsets = [0, 0], sizes = [8, 32], strides = [1, 1]} : vector<8x128xf32> to vector<8x32xf32>
    %40 = vector.extract_strided_slice %37 {offsets = [0, 32], sizes = [8, 32], strides = [1, 1]} : vector<8x128xf32> to vector<8x32xf32>
    %41 = vector.extract_strided_slice %38 {offsets = [0, 64], sizes = [8, 32], strides = [1, 1]} : vector<8x128xf32> to vector<8x32xf32>
    %42 = vector.extract_strided_slice %37 {offsets = [0, 96], sizes = [8, 32], strides = [1, 1]} : vector<8x128xf32> to vector<8x32xf32>
    %43 = arith.mulf %40, %26 : vector<8x32xf32>
    %44 = arith.mulf %39, %41 : vector<8x32xf32>
    %45 = arith.addf %43, %44 : vector<8x32xf32>
    %46 = math.tanh %45 : vector<8x32xf32>
    %47 = arith.mulf %42, %46 : vector<8x32xf32>
    %48 = vector.extract_strided_slice %7 {offsets = [2, 0, 0], sizes = [1, 8, 128], strides = [1, 1, 1]} : vector<8x8x128xf32> to vector<1x8x128xf32>
    %49 = vector.shape_cast %48 : vector<1x8x128xf32> to vector<8x128xf32>
    %cst_11 = arith.constant dense<0.000000e+00> : vector<8x128xf32>
    %50 = tpu.matmul %47, %1, %cst_11 {dimension_numbers = #tpu.dot_dimension_numbers<[1], [0], [0], [1], [0, 0, 1, 1], [], []>} : vector<8x32xf32>, vector<32x128xf32>, vector<8x128xf32> -> vector<8x128xf32>
    %51 = arith.addf %49, %50 : vector<8x128xf32>
    %52 = arith.negf %51 : vector<8x128xf32>
    %53 = math.exp %52 : vector<8x128xf32>
    %cst_12 = arith.constant 1.000000e+00 : f32
    %54 = vector.broadcast %cst_12 : f32 to vector<8x128xf32>
    %55 = arith.addf %54, %53 : vector<8x128xf32>
    %56 = arith.divf %54, %55 : vector<8x128xf32>
    %57 = math.tanh %51 : vector<8x128xf32>
    %58 = vector.extract_strided_slice %56 {offsets = [0, 0], sizes = [8, 32], strides = [1, 1]} : vector<8x128xf32> to vector<8x32xf32>
    %59 = vector.extract_strided_slice %56 {offsets = [0, 32], sizes = [8, 32], strides = [1, 1]} : vector<8x128xf32> to vector<8x32xf32>
    %60 = vector.extract_strided_slice %57 {offsets = [0, 64], sizes = [8, 32], strides = [1, 1]} : vector<8x128xf32> to vector<8x32xf32>
    %61 = vector.extract_strided_slice %56 {offsets = [0, 96], sizes = [8, 32], strides = [1, 1]} : vector<8x128xf32> to vector<8x32xf32>
    %62 = arith.mulf %59, %45 : vector<8x32xf32>
    %63 = arith.mulf %58, %60 : vector<8x32xf32>
    %64 = arith.addf %62, %63 : vector<8x32xf32>
    %65 = math.tanh %64 : vector<8x32xf32>
    %66 = arith.mulf %61, %65 : vector<8x32xf32>
    %67 = vector.extract_strided_slice %7 {offsets = [3, 0, 0], sizes = [1, 8, 128], strides = [1, 1, 1]} : vector<8x8x128xf32> to vector<1x8x128xf32>
    %68 = vector.shape_cast %67 : vector<1x8x128xf32> to vector<8x128xf32>
    %cst_13 = arith.constant dense<0.000000e+00> : vector<8x128xf32>
    %69 = tpu.matmul %66, %1, %cst_13 {dimension_numbers = #tpu.dot_dimension_numbers<[1], [0], [0], [1], [0, 0, 1, 1], [], []>} : vector<8x32xf32>, vector<32x128xf32>, vector<8x128xf32> -> vector<8x128xf32>
    %70 = arith.addf %68, %69 : vector<8x128xf32>
    %71 = arith.negf %70 : vector<8x128xf32>
    %72 = math.exp %71 : vector<8x128xf32>
    %cst_14 = arith.constant 1.000000e+00 : f32
    %73 = vector.broadcast %cst_14 : f32 to vector<8x128xf32>
    %74 = arith.addf %73, %72 : vector<8x128xf32>
    %75 = arith.divf %73, %74 : vector<8x128xf32>
    %76 = math.tanh %70 : vector<8x128xf32>
    %77 = vector.extract_strided_slice %75 {offsets = [0, 0], sizes = [8, 32], strides = [1, 1]} : vector<8x128xf32> to vector<8x32xf32>
    %78 = vector.extract_strided_slice %75 {offsets = [0, 32], sizes = [8, 32], strides = [1, 1]} : vector<8x128xf32> to vector<8x32xf32>
    %79 = vector.extract_strided_slice %76 {offsets = [0, 64], sizes = [8, 32], strides = [1, 1]} : vector<8x128xf32> to vector<8x32xf32>
    %80 = vector.extract_strided_slice %75 {offsets = [0, 96], sizes = [8, 32], strides = [1, 1]} : vector<8x128xf32> to vector<8x32xf32>
    %81 = arith.mulf %78, %64 : vector<8x32xf32>
    %82 = arith.mulf %77, %79 : vector<8x32xf32>
    %83 = arith.addf %81, %82 : vector<8x32xf32>
    %84 = math.tanh %83 : vector<8x32xf32>
    %85 = arith.mulf %80, %84 : vector<8x32xf32>
    %86 = vector.extract_strided_slice %7 {offsets = [4, 0, 0], sizes = [1, 8, 128], strides = [1, 1, 1]} : vector<8x8x128xf32> to vector<1x8x128xf32>
    %87 = vector.shape_cast %86 : vector<1x8x128xf32> to vector<8x128xf32>
    %cst_15 = arith.constant dense<0.000000e+00> : vector<8x128xf32>
    %88 = tpu.matmul %85, %1, %cst_15 {dimension_numbers = #tpu.dot_dimension_numbers<[1], [0], [0], [1], [0, 0, 1, 1], [], []>} : vector<8x32xf32>, vector<32x128xf32>, vector<8x128xf32> -> vector<8x128xf32>
    %89 = arith.addf %87, %88 : vector<8x128xf32>
    %90 = arith.negf %89 : vector<8x128xf32>
    %91 = math.exp %90 : vector<8x128xf32>
    %cst_16 = arith.constant 1.000000e+00 : f32
    %92 = vector.broadcast %cst_16 : f32 to vector<8x128xf32>
    %93 = arith.addf %92, %91 : vector<8x128xf32>
    %94 = arith.divf %92, %93 : vector<8x128xf32>
    %95 = math.tanh %89 : vector<8x128xf32>
    %96 = vector.extract_strided_slice %94 {offsets = [0, 0], sizes = [8, 32], strides = [1, 1]} : vector<8x128xf32> to vector<8x32xf32>
    %97 = vector.extract_strided_slice %94 {offsets = [0, 32], sizes = [8, 32], strides = [1, 1]} : vector<8x128xf32> to vector<8x32xf32>
    %98 = vector.extract_strided_slice %95 {offsets = [0, 64], sizes = [8, 32], strides = [1, 1]} : vector<8x128xf32> to vector<8x32xf32>
    %99 = vector.extract_strided_slice %94 {offsets = [0, 96], sizes = [8, 32], strides = [1, 1]} : vector<8x128xf32> to vector<8x32xf32>
    %100 = arith.mulf %97, %83 : vector<8x32xf32>
    %101 = arith.mulf %96, %98 : vector<8x32xf32>
    %102 = arith.addf %100, %101 : vector<8x32xf32>
    %103 = math.tanh %102 : vector<8x32xf32>
    %104 = arith.mulf %99, %103 : vector<8x32xf32>
    %105 = vector.extract_strided_slice %7 {offsets = [5, 0, 0], sizes = [1, 8, 128], strides = [1, 1, 1]} : vector<8x8x128xf32> to vector<1x8x128xf32>
    %106 = vector.shape_cast %105 : vector<1x8x128xf32> to vector<8x128xf32>
    %cst_17 = arith.constant dense<0.000000e+00> : vector<8x128xf32>
    %107 = tpu.matmul %104, %1, %cst_17 {dimension_numbers = #tpu.dot_dimension_numbers<[1], [0], [0], [1], [0, 0, 1, 1], [], []>} : vector<8x32xf32>, vector<32x128xf32>, vector<8x128xf32> -> vector<8x128xf32>
    %108 = arith.addf %106, %107 : vector<8x128xf32>
    %109 = arith.negf %108 : vector<8x128xf32>
    %110 = math.exp %109 : vector<8x128xf32>
    %cst_18 = arith.constant 1.000000e+00 : f32
    %111 = vector.broadcast %cst_18 : f32 to vector<8x128xf32>
    %112 = arith.addf %111, %110 : vector<8x128xf32>
    %113 = arith.divf %111, %112 : vector<8x128xf32>
    %114 = math.tanh %108 : vector<8x128xf32>
    %115 = vector.extract_strided_slice %113 {offsets = [0, 0], sizes = [8, 32], strides = [1, 1]} : vector<8x128xf32> to vector<8x32xf32>
    %116 = vector.extract_strided_slice %113 {offsets = [0, 32], sizes = [8, 32], strides = [1, 1]} : vector<8x128xf32> to vector<8x32xf32>
    %117 = vector.extract_strided_slice %114 {offsets = [0, 64], sizes = [8, 32], strides = [1, 1]} : vector<8x128xf32> to vector<8x32xf32>
    %118 = vector.extract_strided_slice %113 {offsets = [0, 96], sizes = [8, 32], strides = [1, 1]} : vector<8x128xf32> to vector<8x32xf32>
    %119 = arith.mulf %116, %102 : vector<8x32xf32>
    %120 = arith.mulf %115, %117 : vector<8x32xf32>
    %121 = arith.addf %119, %120 : vector<8x32xf32>
    %122 = math.tanh %121 : vector<8x32xf32>
    %123 = arith.mulf %118, %122 : vector<8x32xf32>
    %124 = vector.extract_strided_slice %7 {offsets = [6, 0, 0], sizes = [1, 8, 128], strides = [1, 1, 1]} : vector<8x8x128xf32> to vector<1x8x128xf32>
    %125 = vector.shape_cast %124 : vector<1x8x128xf32> to vector<8x128xf32>
    %cst_19 = arith.constant dense<0.000000e+00> : vector<8x128xf32>
    %126 = tpu.matmul %123, %1, %cst_19 {dimension_numbers = #tpu.dot_dimension_numbers<[1], [0], [0], [1], [0, 0, 1, 1], [], []>} : vector<8x32xf32>, vector<32x128xf32>, vector<8x128xf32> -> vector<8x128xf32>
    %127 = arith.addf %125, %126 : vector<8x128xf32>
    %128 = arith.negf %127 : vector<8x128xf32>
    %129 = math.exp %128 : vector<8x128xf32>
    %cst_20 = arith.constant 1.000000e+00 : f32
    %130 = vector.broadcast %cst_20 : f32 to vector<8x128xf32>
    %131 = arith.addf %130, %129 : vector<8x128xf32>
    %132 = arith.divf %130, %131 : vector<8x128xf32>
    %133 = math.tanh %127 : vector<8x128xf32>
    %134 = vector.extract_strided_slice %132 {offsets = [0, 0], sizes = [8, 32], strides = [1, 1]} : vector<8x128xf32> to vector<8x32xf32>
    %135 = vector.extract_strided_slice %132 {offsets = [0, 32], sizes = [8, 32], strides = [1, 1]} : vector<8x128xf32> to vector<8x32xf32>
    %136 = vector.extract_strided_slice %133 {offsets = [0, 64], sizes = [8, 32], strides = [1, 1]} : vector<8x128xf32> to vector<8x32xf32>
    %137 = vector.extract_strided_slice %132 {offsets = [0, 96], sizes = [8, 32], strides = [1, 1]} : vector<8x128xf32> to vector<8x32xf32>
    %138 = arith.mulf %135, %121 : vector<8x32xf32>
    %139 = arith.mulf %134, %136 : vector<8x32xf32>
    %140 = arith.addf %138, %139 : vector<8x32xf32>
    %141 = math.tanh %140 : vector<8x32xf32>
    %142 = arith.mulf %137, %141 : vector<8x32xf32>
    %143 = vector.extract_strided_slice %7 {offsets = [7, 0, 0], sizes = [1, 8, 128], strides = [1, 1, 1]} : vector<8x8x128xf32> to vector<1x8x128xf32>
    %144 = vector.shape_cast %143 : vector<1x8x128xf32> to vector<8x128xf32>
    %cst_21 = arith.constant dense<0.000000e+00> : vector<8x128xf32>
    %145 = tpu.matmul %142, %1, %cst_21 {dimension_numbers = #tpu.dot_dimension_numbers<[1], [0], [0], [1], [0, 0, 1, 1], [], []>} : vector<8x32xf32>, vector<32x128xf32>, vector<8x128xf32> -> vector<8x128xf32>
    %146 = arith.addf %144, %145 : vector<8x128xf32>
    %147 = arith.negf %146 : vector<8x128xf32>
    %148 = math.exp %147 : vector<8x128xf32>
    %cst_22 = arith.constant 1.000000e+00 : f32
    %149 = vector.broadcast %cst_22 : f32 to vector<8x128xf32>
    %150 = arith.addf %149, %148 : vector<8x128xf32>
    %151 = arith.divf %149, %150 : vector<8x128xf32>
    %152 = math.tanh %146 : vector<8x128xf32>
    %153 = vector.extract_strided_slice %151 {offsets = [0, 0], sizes = [8, 32], strides = [1, 1]} : vector<8x128xf32> to vector<8x32xf32>
    %154 = vector.extract_strided_slice %151 {offsets = [0, 32], sizes = [8, 32], strides = [1, 1]} : vector<8x128xf32> to vector<8x32xf32>
    %155 = vector.extract_strided_slice %152 {offsets = [0, 64], sizes = [8, 32], strides = [1, 1]} : vector<8x128xf32> to vector<8x32xf32>
    %156 = vector.extract_strided_slice %151 {offsets = [0, 96], sizes = [8, 32], strides = [1, 1]} : vector<8x128xf32> to vector<8x32xf32>
    %157 = arith.mulf %154, %140 : vector<8x32xf32>
    %158 = arith.mulf %153, %155 : vector<8x32xf32>
    %159 = arith.addf %157, %158 : vector<8x32xf32>
    %160 = math.tanh %159 : vector<8x32xf32>
    %161 = arith.mulf %156, %160 : vector<8x32xf32>
    %162 = vector.shape_cast %28 : vector<8x32xf32> to vector<1x8x32xf32>
    %163 = vector.shape_cast %47 : vector<8x32xf32> to vector<1x8x32xf32>
    %164 = vector.shape_cast %66 : vector<8x32xf32> to vector<1x8x32xf32>
    %165 = vector.shape_cast %85 : vector<8x32xf32> to vector<1x8x32xf32>
    %166 = vector.shape_cast %104 : vector<8x32xf32> to vector<1x8x32xf32>
    %167 = vector.shape_cast %123 : vector<8x32xf32> to vector<1x8x32xf32>
    %168 = vector.shape_cast %142 : vector<8x32xf32> to vector<1x8x32xf32>
    %169 = vector.shape_cast %161 : vector<8x32xf32> to vector<1x8x32xf32>
    %170 = tpu.concatenate %162, %163, %164, %165, %166, %167, %168, %169 in 0 : vector<1x8x32xf32>, vector<1x8x32xf32>, vector<1x8x32xf32>, vector<1x8x32xf32>, vector<1x8x32xf32>, vector<1x8x32xf32>, vector<1x8x32xf32>, vector<1x8x32xf32> -> vector<8x8x32xf32>
    %c0_23 = arith.constant 0 : index
    %c0_24 = arith.constant 0 : index
    %171 = vector.load %arg2[%c0_23, %c0_24] : memref<160x64xf32, #tpu.memory_space<vmem>>, vector<1x32xf32>
    %172 = vector.shape_cast %171 : vector<1x32xf32> to vector<1x1x32xf32>
    %173 = vector.broadcast %172 : vector<1x1x32xf32> to vector<8x8x32xf32>
    %174 = arith.mulf %170, %173 : vector<8x8x32xf32>
    %cst_25 = arith.constant dense<0.000000e+00> : vector<8x8xf32>
    %175 = vector.multi_reduction <add>, %174, %cst_25 [2] : vector<8x8x32xf32> to vector<8x8xf32>
    %176 = vector.shape_cast %175 : vector<8x8xf32> to vector<8x8x1xf32>
    %cst_26 = arith.constant dense<0xFF800000> : vector<8x1xf32>
    %177 = vector.multi_reduction <maximumf>, %176, %cst_26 [0] : vector<8x8x1xf32> to vector<8x1xf32>
    %178 = vector.shape_cast %177 : vector<8x1xf32> to vector<1x8x1xf32>
    %179 = vector.broadcast %178 : vector<1x8x1xf32> to vector<8x8x1xf32>
    %180 = arith.subf %176, %179 : vector<8x8x1xf32>
    %181 = math.exp %180 : vector<8x8x1xf32>
    %cst_27 = arith.constant dense<0.000000e+00> : vector<8x1xf32>
    %182 = vector.multi_reduction <add>, %181, %cst_27 [0] : vector<8x8x1xf32> to vector<8x1xf32>
    %183 = vector.broadcast %181 : vector<8x8x1xf32> to vector<8x8x32xf32>
    %184 = arith.mulf %183, %170 : vector<8x8x32xf32>
    %cst_28 = arith.constant dense<0.000000e+00> : vector<8x32xf32>
    %185 = vector.multi_reduction <add>, %184, %cst_28 [0] : vector<8x8x32xf32> to vector<8x32xf32>
    %186 = vector.broadcast %182 : vector<8x1xf32> to vector<8x32xf32>
    %187 = arith.divf %185, %186 : vector<8x32xf32>
    %c8_29 = arith.constant 8 : index
    %c0_30 = arith.constant 0 : index
    %188 = vector.load %arg2[%c8_29, %c0_30] : memref<160x64xf32, #tpu.memory_space<vmem>>, vector<32x64xf32>
    %c40_31 = arith.constant 40 : index
    %c0_32 = arith.constant 0 : index
    %189 = vector.load %arg2[%c40_31, %c0_32] : memref<160x64xf32, #tpu.memory_space<vmem>>, vector<1x64xf32>
    %c48 = arith.constant 48 : index
    %c0_33 = arith.constant 0 : index
    %190 = vector.load %arg2[%c48, %c0_33] : memref<160x64xf32, #tpu.memory_space<vmem>>, vector<64x32xf32>
    %c112 = arith.constant 112 : index
    %c0_34 = arith.constant 0 : index
    %191 = vector.load %arg2[%c112, %c0_34] : memref<160x64xf32, #tpu.memory_space<vmem>>, vector<1x32xf32>
    %c120 = arith.constant 120 : index
    %c0_35 = arith.constant 0 : index
    %192 = vector.load %arg2[%c120, %c0_35] : memref<160x64xf32, #tpu.memory_space<vmem>>, vector<32x8xf32>
    %c152 = arith.constant 152 : index
    %c0_36 = arith.constant 0 : index
    %193 = vector.load %arg2[%c152, %c0_36] : memref<160x64xf32, #tpu.memory_space<vmem>>, vector<1x8xf32>
    %cst_37 = arith.constant dense<0.000000e+00> : vector<8x64xf32>
    %194 = tpu.matmul %187, %188, %cst_37 {dimension_numbers = #tpu.dot_dimension_numbers<[1], [0], [0], [1], [0, 0, 1, 1], [], []>} : vector<8x32xf32>, vector<32x64xf32>, vector<8x64xf32> -> vector<8x64xf32>
    %195 = vector.broadcast %189 : vector<1x64xf32> to vector<8x64xf32>
    %196 = arith.addf %194, %195 : vector<8x64xf32>
    %cst_38 = arith.constant 0.000000e+00 : f32
    %197 = vector.broadcast %cst_38 : f32 to vector<8x64xf32>
    %198 = arith.maximumf %196, %197 : vector<8x64xf32>
    %cst_39 = arith.constant dense<0.000000e+00> : vector<8x32xf32>
    %199 = tpu.matmul %198, %190, %cst_39 {dimension_numbers = #tpu.dot_dimension_numbers<[1], [0], [0], [1], [0, 0, 1, 1], [], []>} : vector<8x64xf32>, vector<64x32xf32>, vector<8x32xf32> -> vector<8x32xf32>
    %200 = vector.broadcast %191 : vector<1x32xf32> to vector<8x32xf32>
    %201 = arith.addf %199, %200 : vector<8x32xf32>
    %cst_40 = arith.constant dense<0.000000e+00> : vector<8x8xf32>
    %202 = tpu.matmul %201, %192, %cst_40 {dimension_numbers = #tpu.dot_dimension_numbers<[1], [0], [0], [1], [0, 0, 1, 1], [], []>} : vector<8x32xf32>, vector<32x8xf32>, vector<8x8xf32> -> vector<8x8xf32>
    %203 = vector.broadcast %193 : vector<1x8xf32> to vector<8x8xf32>
    %204 = arith.addf %202, %203 : vector<8x8xf32>
    %c0_41 = arith.constant 0 : index
    %c0_42 = arith.constant 0 : index
    %205 = vector.load %arg3[%c0_41, %c0_42] : memref<8x8xf32, #tpu.memory_space<vmem>>, vector<8x8xf32>
    tpu.vector_store %arg3[%c0_41, %c0_42], %204 {strides = array<i32>} : memref<8x8xf32, #tpu.memory_space<vmem>>, vector<8x8xf32>,
    return
  }
}

</mosaic_0001>

<llo_original>
// kernel: tpu_custom_call.1
$region0: #{tpu_custom_call.1}
  #allocation0 [shape = 'u32[]', space=smem, size = 0x4, offset = 0x4, fixed_abs, tag = 'smem constant byte address 0x4 - core index']
  #allocation1 [shape = 'u32[144,128]{1,0:T(1,128)}', space=vmem, size = 0x12000, scoped, tag = 'internal scratch']
  %s0 = inlined_call_operand.vmem [shape: f32[64,4], index: 0, kind: input, shape index: {}]
  %s1 = inlined_call_operand.vmem [shape: f32[48,128], index: 1, kind: input, shape index: {}]
  %s2 = inlined_call_operand.vmem [shape: f32[160,64], index: 2, kind: input, shape index: {}]
  %s3 = inlined_call_operand.hbm [shape: f32[8,8], index: 3, kind: output, shape index: {}]
  %s4 = sld [smem:[#allocation0]]
  $region22: #{tpu_custom_call.1} parent=0
    _
  %s6 = ssub.s32 1, %s4
  %s7 = scalar_select 0, %s6, %s4
  $region1: #{tpu_custom_call.1} parent=0
    #allocation2 [shape = 'u8[4096]{0}', space=vmem, size = 0x1000, scoped, tag = 'output window, operand 0, single buffered']
    #allocation3 [shape = 's32[1]{0}', space=sflag, size = 0x4, scoped, tag = 'scoped memory for tpu_custom_call.1']
    %8 = vsyncpa [#allocation3], 0
    // Predicated region
    $region2: #{tpu_custom_call.1} parent=1 // pred_check
      _
    $region3: #{tpu_custom_call.1} parent=1 // pred_check_branch
      %10 = sbr.rel (0) target = $region5
    $region4: #{tpu_custom_call.1} parent=1 // pred_region
      _
    $region5: #{tpu_custom_call.1} parent=1 // pred_fallthru
      _
    // Predicated region
    $region6: #{tpu_custom_call.1} parent=1 // pred_check
      _
    $region7: #{tpu_custom_call.1} parent=1 // pred_check_branch
      %12 = sbr.rel (0) target = $region9
    $region8: #{tpu_custom_call.1} parent=1 // pred_region
      _
    $region9: #{tpu_custom_call.1} parent=1 // pred_fallthru
      _
    // Predicated region
    $region10: #{tpu_custom_call.1} parent=1 // pred_check
      _
    $region11: #{tpu_custom_call.1} parent=1 // pred_check_branch
      %14 = sbr.rel (0) target = $region13
    $region12: #{tpu_custom_call.1} parent=1 // pred_region
      _
    $region13: #{tpu_custom_call.1} parent=1 // pred_fallthru
      _
    %v15 = vld [vmem:[%s1] sm:$0xf]
    %v16 = vld [vmem:[%s1 + $0x8] sm:$0xff]
    %v17 = vld [vmem:[%s1 + $0x10] sm:$0xff]
    %v18 = vld [vmem:[%s1 + $0x18] sm:$0xff]
    %v19 = vld [vmem:[%s1 + $0x20] sm:$0xff]
    %v20 = vld [vmem:[%s1 + $0x28] sm:$0x1]
    %v21 = vld [vmem:[%s0] sm:$0xff]
    %v22 = vld [vmem:[%s0 + $0x8] sm:$0xff]
    %v23 = vld [vmem:[%s0 + $0x10] sm:$0xff]
    %v24 = vld [vmem:[%s0 + $0x18] sm:$0xff]
    %v25 = vld [vmem:[%s0 + $0x20] sm:$0xff]
    %v26 = vld [vmem:[%s0 + $0x28] sm:$0xff]
    %v27 = vld [vmem:[%s0 + $0x30] sm:$0xff]
    %v28 = vld [vmem:[%s0 + $0x38] sm:$0xff]
    %v29 = vlaneseq
    %v30 = vshrl.u32 %v29, 7
    %v31 = vsub.s32 0, %v30
    %v32 = vrot.slane %v20, %v31
    %vm33 = vcmask 31744
    %v35 = vsel %vm33, %v21, 0
    %v38 = vsel %vm33, %v22, 0
    %v41 = vsel %vm33, %v23, 0
    %v44 = vsel %vm33, %v24, 0
    %v47 = vsel %vm33, %v25, 0
    %v50 = vsel %vm33, %v26, 0
    %v53 = vsel %vm33, %v27, 0
    %v56 = vsel %vm33, %v28, 0
    %vm58 = vcmask 1043456
    %v60 = vsel %vm58, %v15, 0
    %62 = vmatprep.subr.mxu0 0.0
    %63 = vmatpush1.msra.mxu0 0.0
    %64 = vmatprep.subr.mxu0 0.0
    %65 = vmatpush1.msra.mxu0 0.0
    %66 = vmatprep.subr.mxu0 0.0
    %67 = vmatpush1.msra.mxu0 0.0
    %68 = vmatprep.subr.mxu0 0.0
    %69 = vmatpush1.msra.mxu0 0.0
    %70 = vmatprep.subr.mxu0 0.0
    %71 = vmatpush1.msra.mxu0 0.0
    %72 = vmatprep.subr.mxu0 0.0
    %73 = vmatpush1.msra.mxu0 0.0
    %74 = vmatprep.subr.mxu0 0.0
    %75 = vmatpush1.msra.mxu0 0.0
    %76 = vmatprep.subr.mxu0 0.0
    %77 = vmatpush1.msra.mxu0 0.0
    %78 = vmatprep.subr.mxu0 0.0
    %79 = vmatpush1.msra.mxu0 0.0
    %80 = vmatprep.subr.mxu0 0.0
    %81 = vmatpush1.msra.mxu0 0.0
    %82 = vmatprep.subr.mxu0 0.0
    %83 = vmatpush1.msra.mxu0 0.0
    %84 = vmatprep.subr.mxu0 0.0
    %85 = vmatpush1.msra.mxu0 0.0
    %86 = vmatprep.subr.mxu0 0.0
    %87 = vmatpush1.msra.mxu0 0.0
    %88 = vmatprep.subr.mxu0 0.0
    %89 = vmatpush1.msra.mxu0 0.0
    %90 = vmatprep.subr.mxu0 0.0
    %91 = vmatpush1.msra.mxu0 0.0
    %92 = vmatprep.subr.mxu0 0.0
    %93 = vmatpush1.msra.mxu0 %v60
    %94 = vmatprep.subr.mxu0 0.0
    %95 = vmatpush2.msra.mxu0 0.0
    %96 = vmatprep.subr.mxu0 0.0
    %97 = vmatpush2.msra.mxu0 0.0
    %98 = vmatprep.subr.mxu0 0.0
    %99 = vmatpush2.msra.mxu0 0.0
    %100 = vmatprep.subr.mxu0 0.0
    %101 = vmatpush2.msra.mxu0 0.0
    %102 = vmatprep.subr.mxu0 0.0
    %103 = vmatpush2.msra.mxu0 0.0
    %104 = vmatprep.subr.mxu0 0.0
    %105 = vmatpush2.msra.mxu0 0.0
    %106 = vmatprep.subr.mxu0 0.0
    %107 = vmatpush2.msra.mxu0 0.0
    %108 = vmatprep.subr.mxu0 0.0
    %109 = vmatpush2.msra.mxu0 0.0
    %110 = vmatprep.subr.mxu0 0.0
    %111 = vmatpush2.msra.mxu0 0.0
    %112 = vmatprep.subr.mxu0 0.0
    %113 = vmatpush2.msra.mxu0 0.0
    %114 = vmatprep.subr.mxu0 0.0
    %115 = vmatpush2.msra.mxu0 0.0
    %116 = vmatprep.subr.mxu0 0.0
    %117 = vmatpush2.msra.mxu0 0.0
    %118 = vmatprep.subr.mxu0 0.0
    %119 = vmatpush2.msra.mxu0 0.0
    %120 = vmatprep.subr.mxu0 0.0
    %121 = vmatpush2.msra.mxu0 0.0
    %122 = vmatprep.subr.mxu0 0.0
    %123 = vmatpush2.msra.mxu0 0.0
    %124 = vmatprep.subr.mxu0 0.0
    %125 = vmatpush2.msra.mxu0 0.0
    %126 = vmatprep.mubr.f32.mxu0 0.0
    %127 = vmatmul.mubr.f32.gmra.mxu0 %v35
    %v128 = vpop.f32.mrf.mxu0
    %v129 = vadd.f32 %v32, %v128
    %v130 = vpop.f32.mrf.mxu0
    %131 = vmatprep.mubr.f32.mxu0 0.0
    %132 = vmatmul.mubr.f32.gmra.mxu0 %v38
    %v133 = vpop.f32.mrf.mxu0
    %v134 = vadd.f32 %v32, %v133
    %v135 = vpop.f32.mrf.mxu0
    %136 = vmatprep.mubr.f32.mxu0 0.0
    %137 = vmatmul.mubr.f32.gmra.mxu0 %v41
    %v138 = vpop.f32.mrf.mxu0
    %v139 = vadd.f32 %v32, %v138
    %v140 = vpop.f32.mrf.mxu0
    %141 = vmatprep.mubr.f32.mxu0 0.0
    %142 = vmatmul.mubr.f32.gmra.mxu0 %v44
    %v143 = vpop.f32.mrf.mxu0
    %v144 = vadd.f32 %v32, %v143
    %v145 = vpop.f32.mrf.mxu0
    %146 = vmatprep.mubr.f32.mxu0 0.0
    %147 = vmatmul.mubr.f32.gmra.mxu0 %v47
    %v148 = vpop.f32.mrf.mxu0
    %v149 = vadd.f32 %v32, %v148
    %v150 = vpop.f32.mrf.mxu0
    %151 = vmatprep.mubr.f32.mxu0 0.0
    %152 = vmatmul.mubr.f32.gmra.mxu0 %v50
    %v153 = vpop.f32.mrf.mxu0
    %v154 = vadd.f32 %v32, %v153
    %v155 = vpop.f32.mrf.mxu0
    %156 = vmatprep.mubr.f32.mxu0 0.0
    %157 = vmatmul.mubr.f32.gmra.mxu0 %v53
    %v158 = vpop.f32.mrf.mxu0
    %v159 = vadd.f32 %v32, %v158
    %v160 = vpop.f32.mrf.mxu0
    %161 = vmatprep.mubr.f32.mxu0 0.0
    %162 = vmatmul.mubr.f32.gmra.mxu0 %v56
    %v163 = vpop.f32.mrf.mxu0
    %v164 = vadd.f32 %v32, %v163
    %v165 = vpop.f32.mrf.mxu0
    %166 = vdwg.mxu0
    %vm167 = vcmask 261120
    %v169 = vsel %vm167, 0.0, 0
    %171 = vmatprep.subr.mxu0 0.0
    %172 = vmatpush1.msra.mxu0 0.0
    %173 = vmatprep.subr.mxu0 0.0
    %174 = vmatpush1.msra.mxu0 0.0
    %175 = vmatprep.subr.mxu0 0.0
    %176 = vmatpush1.msra.mxu0 0.0
    %177 = vmatprep.subr.mxu0 0.0
    %178 = vmatpush1.msra.mxu0 0.0
    %179 = vmatprep.subr.mxu0 0.0
    %180 = vmatpush1.msra.mxu0 0.0
    %181 = vmatprep.subr.mxu0 0.0
    %182 = vmatpush1.msra.mxu0 0.0
    %183 = vmatprep.subr.mxu0 0.0
    %184 = vmatpush1.msra.mxu0 0.0
    %185 = vmatprep.subr.mxu0 0.0
    %186 = vmatpush1.msra.mxu0 0.0
    %187 = vmatprep.subr.mxu0 0.0
    %188 = vmatpush1.msra.mxu0 0.0
    %189 = vmatprep.subr.mxu0 0.0
    %190 = vmatpush1.msra.mxu0 0.0
    %191 = vmatprep.subr.mxu0 0.0
    %192 = vmatpush1.msra.mxu0 0.0
    %193 = vmatprep.subr.mxu0 0.0
    %194 = vmatpush1.msra.mxu0 0.0
    %195 = vmatprep.subr.mxu0 0.0
    %196 = vmatpush1.msra.mxu0 %v19
    %197 = vmatprep.subr.mxu0 0.0
    %198 = vmatpush1.msra.mxu0 %v18
    %199 = vmatprep.subr.mxu0 0.0
    %200 = vmatpush1.msra.mxu0 %v17
    %201 = vmatprep.subr.mxu0 0.0
    %202 = vmatpush1.msra.mxu0 %v16
    %203 = vmatprep.subr.mxu0 0.0
    %204 = vmatpush2.msra.mxu0 0.0
    %205 = vmatprep.subr.mxu0 0.0
    %206 = vmatpush2.msra.mxu0 0.0
    %207 = vmatprep.subr.mxu0 0.0
    %208 = vmatpush2.msra.mxu0 0.0
    %209 = vmatprep.subr.mxu0 0.0
    %210 = vmatpush2.msra.mxu0 0.0
    %211 = vmatprep.subr.mxu0 0.0
    %212 = vmatpush2.msra.mxu0 0.0
    %213 = vmatprep.subr.mxu0 0.0
    %214 = vmatpush2.msra.mxu0 0.0
    %215 = vmatprep.subr.mxu0 0.0
    %216 = vmatpush2.msra.mxu0 0.0
    %217 = vmatprep.subr.mxu0 0.0
    %218 = vmatpush2.msra.mxu0 0.0
    %219 = vmatprep.subr.mxu0 0.0
    %220 = vmatpush2.msra.mxu0 0.0
    %221 = vmatprep.subr.mxu0 0.0
    %222 = vmatpush2.msra.mxu0 0.0
    %223 = vmatprep.subr.mxu0 0.0
    %224 = vmatpush2.msra.mxu0 0.0
    %225 = vmatprep.subr.mxu0 0.0
    %226 = vmatpush2.msra.mxu0 0.0
    %227 = vmatprep.subr.mxu0 0.0
    %228 = vmatpush2.msra.mxu0 0.0
    %229 = vmatprep.subr.mxu0 0.0
    %230 = vmatpush2.msra.mxu0 0.0
    %231 = vmatprep.subr.mxu0 0.0
    %232 = vmatpush2.msra.mxu0 0.0
    %233 = vmatprep.subr.mxu0 0.0
    %234 = vmatpush2.msra.mxu0 0.0
    %235 = vmatprep.mubr.f32.mxu0 0.0
    %236 = vmatmul.mubr.f32.gmra.mxu0 %v169
    %v237 = vpop.f32.mrf.mxu0
    %v238 = vadd.f32 0.0, %v237
    %v239 = vpop.f32.mrf.mxu0
    %240 = vdwg.mxu0
    %v241 = vadd.f32 %v129, %v238
    %v242 = vxor.u32 %v241, 2147483648
    %v243 = vmul.f32 %v242, 1.442695
    %v244 = vpow.pop %v243
    %v245 = vadd.f32 %v244, 1.0
    %v246 = vrcp.pop %v245
    %v247 = vmul.f32 1.0, %v246
    %v248 = vtanh.pop %v241
    %v249 = vmul.f32 %v247, 0.0
    %251 = vrot.lane.b32.xlu0 %v248, 64
    %v252 = vpop.permute.xlu0 %251
    %v254 = vmul.f32 %v247, %v252
    %256 = vrot.lane.b32.xlu0 %v254, 32
    %v257 = vpop.permute.xlu0 %256
    %v259 = vadd.f32 %v249, %v257
    %v260 = vtanh.pop %v259
    %262 = vrot.lane.b32.xlu0 %v260, 64
    %v263 = vpop.permute.xlu0 %262
    %v265 = vmul.f32 %v247, %v263
    %267 = vrot.lane.b32.xlu0 %v265, 32
    %v268 = vpop.permute.xlu0 %267
    %v269 = vsel %vm167, %v268, 0
    %271 = vmatprep.subr.mxu0 0.0
    %272 = vmatpush1.msra.mxu0 0.0
    %273 = vmatprep.subr.mxu0 0.0
    %274 = vmatpush1.msra.mxu0 0.0
    %275 = vmatprep.subr.mxu0 0.0
    %276 = vmatpush1.msra.mxu0 0.0
    %277 = vmatprep.subr.mxu0 0.0
    %278 = vmatpush1.msra.mxu0 0.0
    %279 = vmatprep.subr.mxu0 0.0
    %280 = vmatpush1.msra.mxu0 0.0
    %281 = vmatprep.subr.mxu0 0.0
    %282 = vmatpush1.msra.mxu0 0.0
    %283 = vmatprep.subr.mxu0 0.0
    %284 = vmatpush1.msra.mxu0 0.0
    %285 = vmatprep.subr.mxu0 0.0
    %286 = vmatpush1.msra.mxu0 0.0
    %287 = vmatprep.subr.mxu0 0.0
    %288 = vmatpush1.msra.mxu0 0.0
    %289 = vmatprep.subr.mxu0 0.0
    %290 = vmatpush1.msra.mxu0 0.0
    %291 = vmatprep.subr.mxu0 0.0
    %292 = vmatpush1.msra.mxu0 0.0
    %293 = vmatprep.subr.mxu0 0.0
    %294 = vmatpush1.msra.mxu0 0.0
    %295 = vmatprep.subr.mxu0 0.0
    %296 = vmatpush1.msra.mxu0 %v19
    %297 = vmatprep.subr.mxu0 0.0
    %298 = vmatpush1.msra.mxu0 %v18
    %299 = vmatprep.subr.mxu0 0.0
    %300 = vmatpush1.msra.mxu0 %v17
    %301 = vmatprep.subr.mxu0 0.0
    %302 = vmatpush1.msra.mxu0 %v16
    %303 = vmatprep.subr.mxu0 0.0
    %304 = vmatpush2.msra.mxu0 0.0
    %305 = vmatprep.subr.mxu0 0.0
    %306 = vmatpush2.msra.mxu0 0.0
    %307 = vmatprep.subr.mxu0 0.0
    %308 = vmatpush2.msra.mxu0 0.0
    %309 = vmatprep.subr.mxu0 0.0
    %310 = vmatpush2.msra.mxu0 0.0
    %311 = vmatprep.subr.mxu0 0.0
    %312 = vmatpush2.msra.mxu0 0.0
    %313 = vmatprep.subr.mxu0 0.0
    %314 = vmatpush2.msra.mxu0 0.0
    %315 = vmatprep.subr.mxu0 0.0
    %316 = vmatpush2.msra.mxu0 0.0
    %317 = vmatprep.subr.mxu0 0.0
    %318 = vmatpush2.msra.mxu0 0.0
    %319 = vmatprep.subr.mxu0 0.0
    %320 = vmatpush2.msra.mxu0 0.0
    %321 = vmatprep.subr.mxu0 0.0
    %322 = vmatpush2.msra.mxu0 0.0
    %323 = vmatprep.subr.mxu0 0.0
    %324 = vmatpush2.msra.mxu0 0.0
    %325 = vmatprep.subr.mxu0 0.0
    %326 = vmatpush2.msra.mxu0 0.0
    %327 = vmatprep.subr.mxu0 0.0
    %328 = vmatpush2.msra.mxu0 0.0
    %329 = vmatprep.subr.mxu0 0.0
    %330 = vmatpush2.msra.mxu0 0.0
    %331 = vmatprep.subr.mxu0 0.0
    %332 = vmatpush2.msra.mxu0 0.0
    %333 = vmatprep.subr.mxu0 0.0
    %334 = vmatpush2.msra.mxu0 0.0
    %335 = vmatprep.mubr.f32.mxu0 0.0
    %336 = vmatmul.mubr.f32.gmra.mxu0 %v269
    %v337 = vpop.f32.mrf.mxu0
    %v338 = vadd.f32 0.0, %v337
    %v339 = vpop.f32.mrf.mxu0
    %340 = vdwg.mxu0
    %v341 = vadd.f32 %v134, %v338
    %v342 = vxor.u32 %v341, 2147483648
    %v343 = vmul.f32 %v342, 1.442695
    %v344 = vpow.pop %v343
    %v345 = vadd.f32 %v344, 1.0
    %v346 = vrcp.pop %v345
    %v347 = vmul.f32 1.0, %v346
    %v348 = vtanh.pop %v341
    %v349 = vmul.f32 %v347, %v259
    %351 = vrot.lane.b32.xlu0 %v348, 64
    %v352 = vpop.permute.xlu0 %351
    %v354 = vmul.f32 %v347, %v352
    %356 = vrot.lane.b32.xlu0 %v354, 32
    %v357 = vpop.permute.xlu0 %356
    %v359 = vadd.f32 %v349, %v357
    %v360 = vtanh.pop %v359
    %362 = vrot.lane.b32.xlu0 %v360, 64
    %v363 = vpop.permute.xlu0 %362
    %v365 = vmul.f32 %v347, %v363
    %367 = vrot.lane.b32.xlu0 %v365, 32
    %v368 = vpop.permute.xlu0 %367
    %v369 = vsel %vm167, %v368, 0
    %371 = vmatprep.subr.mxu0 0.0
    %372 = vmatpush1.msra.mxu0 0.0
    %373 = vmatprep.subr.mxu0 0.0
    %374 = vmatpush1.msra.mxu0 0.0
    %375 = vmatprep.subr.mxu0 0.0
    %376 = vmatpush1.msra.mxu0 0.0
    %377 = vmatprep.subr.mxu0 0.0
    %378 = vmatpush1.msra.mxu0 0.0
    %379 = vmatprep.subr.mxu0 0.0
    %380 = vmatpush1.msra.mxu0 0.0
    %381 = vmatprep.subr.mxu0 0.0
    %382 = vmatpush1.msra.mxu0 0.0
    %383 = vmatprep.subr.mxu0 0.0
    %384 = vmatpush1.msra.mxu0 0.0
    %385 = vmatprep.subr.mxu0 0.0
    %386 = vmatpush1.msra.mxu0 0.0
    %387 = vmatprep.subr.mxu0 0.0
    %388 = vmatpush1.msra.mxu0 0.0
    %389 = vmatprep.subr.mxu0 0.0
    %390 = vmatpush1.msra.mxu0 0.0
    %391 = vmatprep.subr.mxu0 0.0
    %392 = vmatpush1.msra.mxu0 0.0
    %393 = vmatprep.subr.mxu0 0.0
    %394 = vmatpush1.msra.mxu0 0.0
    %395 = vmatprep.subr.mxu0 0.0
    %396 = vmatpush1.msra.mxu0 %v19
    %397 = vmatprep.subr.mxu0 0.0
    %398 = vmatpush1.msra.mxu0 %v18
    %399 = vmatprep.subr.mxu0 0.0
    %400 = vmatpush1.msra.mxu0 %v17
    %401 = vmatprep.subr.mxu0 0.0
    %402 = vmatpush1.msra.mxu0 %v16
    %403 = vmatprep.subr.mxu0 0.0
    %404 = vmatpush2.msra.mxu0 0.0
    %405 = vmatprep.subr.mxu0 0.0
    %406 = vmatpush2.msra.mxu0 0.0
    %407 = vmatprep.subr.mxu0 0.0
    %408 = vmatpush2.msra.mxu0 0.0
    %409 = vmatprep.subr.mxu0 0.0
    %410 = vmatpush2.msra.mxu0 0.0
    %411 = vmatprep.subr.mxu0 0.0
    %412 = vmatpush2.msra.mxu0 0.0
    %413 = vmatprep.subr.mxu0 0.0
    %414 = vmatpush2.msra.mxu0 0.0
    %415 = vmatprep.subr.mxu0 0.0
    %416 = vmatpush2.msra.mxu0 0.0
    %417 = vmatprep.subr.mxu0 0.0
    %418 = vmatpush2.msra.mxu0 0.0
    %419 = vmatprep.subr.mxu0 0.0
    %420 = vmatpush2.msra.mxu0 0.0
    %421 = vmatprep.subr.mxu0 0.0
    %422 = vmatpush2.msra.mxu0 0.0
    %423 = vmatprep.subr.mxu0 0.0
    %424 = vmatpush2.msra.mxu0 0.0
    %425 = vmatprep.subr.mxu0 0.0
    %426 = vmatpush2.msra.mxu0 0.0
    %427 = vmatprep.subr.mxu0 0.0
    %428 = vmatpush2.msra.mxu0 0.0
    %429 = vmatprep.subr.mxu0 0.0
    %430 = vmatpush2.msra.mxu0 0.0
    %431 = vmatprep.subr.mxu0 0.0
    %432 = vmatpush2.msra.mxu0 0.0
    %433 = vmatprep.subr.mxu0 0.0
    %434 = vmatpush2.msra.mxu0 0.0
    %435 = vmatprep.mubr.f32.mxu0 0.0
    %436 = vmatmul.mubr.f32.gmra.mxu0 %v369
    %v437 = vpop.f32.mrf.mxu0
    %v438 = vadd.f32 0.0, %v437
    %v439 = vpop.f32.mrf.mxu0
    %440 = vdwg.mxu0
    %v441 = vadd.f32 %v139, %v438
    %v442 = vxor.u32 %v441, 2147483648
    %v443 = vmul.f32 %v442, 1.442695
    %v444 = vpow.pop %v443
    %v445 = vadd.f32 %v444, 1.0
    %v446 = vrcp.pop %v445
    %v447 = vmul.f32 1.0, %v446
    %v448 = vtanh.pop %v441
    %v449 = vmul.f32 %v447, %v359
    %451 = vrot.lane.b32.xlu0 %v448, 64
    %v452 = vpop.permute.xlu0 %451
    %v454 = vmul.f32 %v447, %v452
    %456 = vrot.lane.b32.xlu0 %v454, 32
    %v457 = vpop.permute.xlu0 %456
    %v459 = vadd.f32 %v449, %v457
    %v460 = vtanh.pop %v459
    %462 = vrot.lane.b32.xlu0 %v460, 64
    %v463 = vpop.permute.xlu0 %462
    %v465 = vmul.f32 %v447, %v463
    %467 = vrot.lane.b32.xlu0 %v465, 32
    %v468 = vpop.permute.xlu0 %467
    %v469 = vsel %vm167, %v468, 0
    %471 = vmatprep.subr.mxu0 0.0
    %472 = vmatpush1.msra.mxu0 0.0
    %473 = vmatprep.subr.mxu0 0.0
    %474 = vmatpush1.msra.mxu0 0.0
    %475 = vmatprep.subr.mxu0 0.0
    %476 = vmatpush1.msra.mxu0 0.0
    %477 = vmatprep.subr.mxu0 0.0
    %478 = vmatpush1.msra.mxu0 0.0
    %479 = vmatprep.subr.mxu0 0.0
    %480 = vmatpush1.msra.mxu0 0.0
    %481 = vmatprep.subr.mxu0 0.0
    %482 = vmatpush1.msra.mxu0 0.0
    %483 = vmatprep.subr.mxu0 0.0
    %484 = vmatpush1.msra.mxu0 0.0
    %485 = vmatprep.subr.mxu0 0.0
    %486 = vmatpush1.msra.mxu0 0.0
    %487 = vmatprep.subr.mxu0 0.0
    %488 = vmatpush1.msra.mxu0 0.0
    %489 = vmatprep.subr.mxu0 0.0
    %490 = vmatpush1.msra.mxu0 0.0
    %491 = vmatprep.subr.mxu0 0.0
    %492 = vmatpush1.msra.mxu0 0.0
    %493 = vmatprep.subr.mxu0 0.0
    %494 = vmatpush1.msra.mxu0 0.0
    %495 = vmatprep.subr.mxu0 0.0
    %496 = vmatpush1.msra.mxu0 %v19
    %497 = vmatprep.subr.mxu0 0.0
    %498 = vmatpush1.msra.mxu0 %v18
    %499 = vmatprep.subr.mxu0 0.0
    %500 = vmatpush1.msra.mxu0 %v17
    %501 = vmatprep.subr.mxu0 0.0
    %502 = vmatpush1.msra.mxu0 %v16
    %503 = vmatprep.subr.mxu0 0.0
    %504 = vmatpush2.msra.mxu0 0.0
    %505 = vmatprep.subr.mxu0 0.0
    %506 = vmatpush2.msra.mxu0 0.0
    %507 = vmatprep.subr.mxu0 0.0
    %508 = vmatpush2.msra.mxu0 0.0
    %509 = vmatprep.subr.mxu0 0.0
    %510 = vmatpush2.msra.mxu0 0.0
    %511 = vmatprep.subr.mxu0 0.0
    %512 = vmatpush2.msra.mxu0 0.0
    %513 = vmatprep.subr.mxu0 0.0
    %514 = vmatpush2.msra.mxu0 0.0
    %515 = vmatprep.subr.mxu0 0.0
    %516 = vmatpush2.msra.mxu0 0.0
    %517 = vmatprep.subr.mxu0 0.0
    %518 = vmatpush2.msra.mxu0 0.0
    %519 = vmatprep.subr.mxu0 0.0
    %520 = vmatpush2.msra.mxu0 0.0
    %521 = vmatprep.subr.mxu0 0.0
    %522 = vmatpush2.msra.mxu0 0.0
    %523 = vmatprep.subr.mxu0 0.0
    %524 = vmatpush2.msra.mxu0 0.0
    %525 = vmatprep.subr.mxu0 0.0
    %526 = vmatpush2.msra.mxu0 0.0
    %527 = vmatprep.subr.mxu0 0.0
    %528 = vmatpush2.msra.mxu0 0.0
    %529 = vmatprep.subr.mxu0 0.0
    %530 = vmatpush2.msra.mxu0 0.0
    %531 = vmatprep.subr.mxu0 0.0
    %532 = vmatpush2.msra.mxu0 0.0
    %533 = vmatprep.subr.mxu0 0.0
    %534 = vmatpush2.msra.mxu0 0.0
    %535 = vmatprep.mubr.f32.mxu0 0.0
    %536 = vmatmul.mubr.f32.gmra.mxu0 %v469
    %v537 = vpop.f32.mrf.mxu0
    %v538 = vadd.f32 0.0, %v537
    %v539 = vpop.f32.mrf.mxu0
    %540 = vdwg.mxu0
    %v541 = vadd.f32 %v144, %v538
    %v542 = vxor.u32 %v541, 2147483648
    %v543 = vmul.f32 %v542, 1.442695
    %v544 = vpow.pop %v543
    %v545 = vadd.f32 %v544, 1.0
    %v546 = vrcp.pop %v545
    %v547 = vmul.f32 1.0, %v546
    %v548 = vtanh.pop %v541
    %v549 = vmul.f32 %v547, %v459
    %551 = vrot.lane.b32.xlu0 %v548, 64
    %v552 = vpop.permute.xlu0 %551
    %v554 = vmul.f32 %v547, %v552
    %556 = vrot.lane.b32.xlu0 %v554, 32
    %v557 = vpop.permute.xlu0 %556
    %v559 = vadd.f32 %v549, %v557
    %v560 = vtanh.pop %v559
    %562 = vrot.lane.b32.xlu0 %v560, 64
    %v563 = vpop.permute.xlu0 %562
    %v565 = vmul.f32 %v547, %v563
    %567 = vrot.lane.b32.xlu0 %v565, 32
    %v568 = vpop.permute.xlu0 %567
    %v569 = vsel %vm167, %v568, 0
    %571 = vmatprep.subr.mxu0 0.0
    %572 = vmatpush1.msra.mxu0 0.0
    %573 = vmatprep.subr.mxu0 0.0
    %574 = vmatpush1.msra.mxu0 0.0
    %575 = vmatprep.subr.mxu0 0.0
    %576 = vmatpush1.msra.mxu0 0.0
    %577 = vmatprep.subr.mxu0 0.0
    %578 = vmatpush1.msra.mxu0 0.0
    %579 = vmatprep.subr.mxu0 0.0
    %580 = vmatpush1.msra.mxu0 0.0
    %581 = vmatprep.subr.mxu0 0.0
    %582 = vmatpush1.msra.mxu0 0.0
    %583 = vmatprep.subr.mxu0 0.0
    %584 = vmatpush1.msra.mxu0 0.0
    %585 = vmatprep.subr.mxu0 0.0
    %586 = vmatpush1.msra.mxu0 0.0
    %587 = vmatprep.subr.mxu0 0.0
    %588 = vmatpush1.msra.mxu0 0.0
    %589 = vmatprep.subr.mxu0 0.0
    %590 = vmatpush1.msra.mxu0 0.0
    %591 = vmatprep.subr.mxu0 0.0
    %592 = vmatpush1.msra.mxu0 0.0
    %593 = vmatprep.subr.mxu0 0.0
    %594 = vmatpush1.msra.mxu0 0.0
    %595 = vmatprep.subr.mxu0 0.0
    %596 = vmatpush1.msra.mxu0 %v19
    %597 = vmatprep.subr.mxu0 0.0
    %598 = vmatpush1.msra.mxu0 %v18
    %599 = vmatprep.subr.mxu0 0.0
    %600 = vmatpush1.msra.mxu0 %v17
    %601 = vmatprep.subr.mxu0 0.0
    %602 = vmatpush1.msra.mxu0 %v16
    %603 = vmatprep.subr.mxu0 0.0
    %604 = vmatpush2.msra.mxu0 0.0
    %605 = vmatprep.subr.mxu0 0.0
    %606 = vmatpush2.msra.mxu0 0.0
    %607 = vmatprep.subr.mxu0 0.0
    %608 = vmatpush2.msra.mxu0 0.0
    %609 = vmatprep.subr.mxu0 0.0
    %610 = vmatpush2.msra.mxu0 0.0
    %611 = vmatprep.subr.mxu0 0.0
    %612 = vmatpush2.msra.mxu0 0.0
    %613 = vmatprep.subr.mxu0 0.0
    %614 = vmatpush2.msra.mxu0 0.0
    %615 = vmatprep.subr.mxu0 0.0
    %616 = vmatpush2.msra.mxu0 0.0
    %617 = vmatprep.subr.mxu0 0.0
    %618 = vmatpush2.msra.mxu0 0.0
    %619 = vmatprep.subr.mxu0 0.0
    %620 = vmatpush2.msra.mxu0 0.0
    %621 = vmatprep.subr.mxu0 0.0
    %622 = vmatpush2.msra.mxu0 0.0
    %623 = vmatprep.subr.mxu0 0.0
    %624 = vmatpush2.msra.mxu0 0.0
    %625 = vmatprep.subr.mxu0 0.0
    %626 = vmatpush2.msra.mxu0 0.0
    %627 = vmatprep.subr.mxu0 0.0
    %628 = vmatpush2.msra.mxu0 0.0
    %629 = vmatprep.subr.mxu0 0.0
    %630 = vmatpush2.msra.mxu0 0.0
    %631 = vmatprep.subr.mxu0 0.0
    %632 = vmatpush2.msra.mxu0 0.0
    %633 = vmatprep.subr.mxu0 0.0
    %634 = vmatpush2.msra.mxu0 0.0
    %635 = vmatprep.mubr.f32.mxu0 0.0
    %636 = vmatmul.mubr.f32.gmra.mxu0 %v569
    %v637 = vpop.f32.mrf.mxu0
    %v638 = vadd.f32 0.0, %v637
    %v639 = vpop.f32.mrf.mxu0
    %640 = vdwg.mxu0
    %v641 = vadd.f32 %v149, %v638
    %v642 = vxor.u32 %v641, 2147483648
    %v643 = vmul.f32 %v642, 1.442695
    %v644 = vpow.pop %v643
    %v645 = vadd.f32 %v644, 1.0
    %v646 = vrcp.pop %v645
    %v647 = vmul.f32 1.0, %v646
    %v648 = vtanh.pop %v641
    %v649 = vmul.f32 %v647, %v559
    %651 = vrot.lane.b32.xlu0 %v648, 64
    %v652 = vpop.permute.xlu0 %651
    %v654 = vmul.f32 %v647, %v652
    %656 = vrot.lane.b32.xlu0 %v654, 32
    %v657 = vpop.permute.xlu0 %656
    %v659 = vadd.f32 %v649, %v657
    %v660 = vtanh.pop %v659
    %662 = vrot.lane.b32.xlu0 %v660, 64
    %v663 = vpop.permute.xlu0 %662
    %v665 = vmul.f32 %v647, %v663
    %667 = vrot.lane.b32.xlu0 %v665, 32
    %v668 = vpop.permute.xlu0 %667
    %v669 = vsel %vm167, %v668, 0
    %671 = vmatprep.subr.mxu0 0.0
    %672 = vmatpush1.msra.mxu0 0.0
    %673 = vmatprep.subr.mxu0 0.0
    %674 = vmatpush1.msra.mxu0 0.0
    %675 = vmatprep.subr.mxu0 0.0
    %676 = vmatpush1.msra.mxu0 0.0
    %677 = vmatprep.subr.mxu0 0.0
    %678 = vmatpush1.msra.mxu0 0.0
    %679 = vmatprep.subr.mxu0 0.0
    %680 = vmatpush1.msra.mxu0 0.0
    %681 = vmatprep.subr.mxu0 0.0
    %682 = vmatpush1.msra.mxu0 0.0
    %683 = vmatprep.subr.mxu0 0.0
    %684 = vmatpush1.msra.mxu0 0.0
    %685 = vmatprep.subr.mxu0 0.0
    %686 = vmatpush1.msra.mxu0 0.0
    %687 = vmatprep.subr.mxu0 0.0
    %688 = vmatpush1.msra.mxu0 0.0
    %689 = vmatprep.subr.mxu0 0.0
    %690 = vmatpush1.msra.mxu0 0.0
    %691 = vmatprep.subr.mxu0 0.0
    %692 = vmatpush1.msra.mxu0 0.0
    %693 = vmatprep.subr.mxu0 0.0
    %694 = vmatpush1.msra.mxu0 0.0
    %695 = vmatprep.subr.mxu0 0.0
    %696 = vmatpush1.msra.mxu0 %v19
    %697 = vmatprep.subr.mxu0 0.0
    %698 = vmatpush1.msra.mxu0 %v18
    %699 = vmatprep.subr.mxu0 0.0
    %700 = vmatpush1.msra.mxu0 %v17
    %701 = vmatprep.subr.mxu0 0.0
    %702 = vmatpush1.msra.mxu0 %v16
    %703 = vmatprep.subr.mxu0 0.0
    %704 = vmatpush2.msra.mxu0 0.0
    %705 = vmatprep.subr.mxu0 0.0
    %706 = vmatpush2.msra.mxu0 0.0
    %707 = vmatprep.subr.mxu0 0.0
    %708 = vmatpush2.msra.mxu0 0.0
    %709 = vmatprep.subr.mxu0 0.0
    %710 = vmatpush2.msra.mxu0 0.0
    %711 = vmatprep.subr.mxu0 0.0
    %712 = vmatpush2.msra.mxu0 0.0
    %713 = vmatprep.subr.mxu0 0.0
    %714 = vmatpush2.msra.mxu0 0.0
    %715 = vmatprep.subr.mxu0 0.0
    %716 = vmatpush2.msra.mxu0 0.0
    %717 = vmatprep.subr.mxu0 0.0
    %718 = vmatpush2.msra.mxu0 0.0
    %719 = vmatprep.subr.mxu0 0.0
    %720 = vmatpush2.msra.mxu0 0.0
    %721 = vmatprep.subr.mxu0 0.0
    %722 = vmatpush2.msra.mxu0 0.0
    %723 = vmatprep.subr.mxu0 0.0
    %724 = vmatpush2.msra.mxu0 0.0
    %725 = vmatprep.subr.mxu0 0.0
    %726 = vmatpush2.msra.mxu0 0.0
    %727 = vmatprep.subr.mxu0 0.0
    %728 = vmatpush2.msra.mxu0 0.0
    %729 = vmatprep.subr.mxu0 0.0
    %730 = vmatpush2.msra.mxu0 0.0
    %731 = vmatprep.subr.mxu0 0.0
    %732 = vmatpush2.msra.mxu0 0.0
    %733 = vmatprep.subr.mxu0 0.0
    %734 = vmatpush2.msra.mxu0 0.0
    %735 = vmatprep.mubr.f32.mxu0 0.0
    %736 = vmatmul.mubr.f32.gmra.mxu0 %v669
    %v737 = vpop.f32.mrf.mxu0
    %v738 = vadd.f32 0.0, %v737
    %v739 = vpop.f32.mrf.mxu0
    %740 = vdwg.mxu0
    %v741 = vadd.f32 %v154, %v738
    %v742 = vxor.u32 %v741, 2147483648
    %v743 = vmul.f32 %v742, 1.442695
    %v744 = vpow.pop %v743
    %v745 = vadd.f32 %v744, 1.0
    %v746 = vrcp.pop %v745
    %v747 = vmul.f32 1.0, %v746
    %v748 = vtanh.pop %v741
    %v749 = vmul.f32 %v747, %v659
    %751 = vrot.lane.b32.xlu0 %v748, 64
    %v752 = vpop.permute.xlu0 %751
    %v754 = vmul.f32 %v747, %v752
    %756 = vrot.lane.b32.xlu0 %v754, 32
    %v757 = vpop.permute.xlu0 %756
    %v759 = vadd.f32 %v749, %v757
    %v760 = vtanh.pop %v759
    %762 = vrot.lane.b32.xlu0 %v760, 64
    %v763 = vpop.permute.xlu0 %762
    %v765 = vmul.f32 %v747, %v763
    %767 = vrot.lane.b32.xlu0 %v765, 32
    %v768 = vpop.permute.xlu0 %767
    %v769 = vsel %vm167, %v768, 0
    %771 = vmatprep.subr.mxu0 0.0
    %772 = vmatpush1.msra.mxu0 0.0
    %773 = vmatprep.subr.mxu0 0.0
    %774 = vmatpush1.msra.mxu0 0.0
    %775 = vmatprep.subr.mxu0 0.0
    %776 = vmatpush1.msra.mxu0 0.0
    %777 = vmatprep.subr.mxu0 0.0
    %778 = vmatpush1.msra.mxu0 0.0
    %779 = vmatprep.subr.mxu0 0.0
    %780 = vmatpush1.msra.mxu0 0.0
    %781 = vmatprep.subr.mxu0 0.0
    %782 = vmatpush1.msra.mxu0 0.0
    %783 = vmatprep.subr.mxu0 0.0
    %784 = vmatpush1.msra.mxu0 0.0
    %785 = vmatprep.subr.mxu0 0.0
    %786 = vmatpush1.msra.mxu0 0.0
    %787 = vmatprep.subr.mxu0 0.0
    %788 = vmatpush1.msra.mxu0 0.0
    %789 = vmatprep.subr.mxu0 0.0
    %790 = vmatpush1.msra.mxu0 0.0
    %791 = vmatprep.subr.mxu0 0.0
    %792 = vmatpush1.msra.mxu0 0.0
    %793 = vmatprep.subr.mxu0 0.0
    %794 = vmatpush1.msra.mxu0 0.0
    %795 = vmatprep.subr.mxu0 0.0
    %796 = vmatpush1.msra.mxu0 %v19
    %797 = vmatprep.subr.mxu0 0.0
    %798 = vmatpush1.msra.mxu0 %v18
    %799 = vmatprep.subr.mxu0 0.0
    %800 = vmatpush1.msra.mxu0 %v17
    %801 = vmatprep.subr.mxu0 0.0
    %802 = vmatpush1.msra.mxu0 %v16
    %803 = vmatprep.subr.mxu0 0.0
    %804 = vmatpush2.msra.mxu0 0.0
    %805 = vmatprep.subr.mxu0 0.0
    %806 = vmatpush2.msra.mxu0 0.0
    %807 = vmatprep.subr.mxu0 0.0
    %808 = vmatpush2.msra.mxu0 0.0
    %809 = vmatprep.subr.mxu0 0.0
    %810 = vmatpush2.msra.mxu0 0.0
    %811 = vmatprep.subr.mxu0 0.0
    %812 = vmatpush2.msra.mxu0 0.0
    %813 = vmatprep.subr.mxu0 0.0
    %814 = vmatpush2.msra.mxu0 0.0
    %815 = vmatprep.subr.mxu0 0.0
    %816 = vmatpush2.msra.mxu0 0.0
    %817 = vmatprep.subr.mxu0 0.0
    %818 = vmatpush2.msra.mxu0 0.0
    %819 = vmatprep.subr.mxu0 0.0
    %820 = vmatpush2.msra.mxu0 0.0
    %821 = vmatprep.subr.mxu0 0.0
    %822 = vmatpush2.msra.mxu0 0.0
    %823 = vmatprep.subr.mxu0 0.0
    %824 = vmatpush2.msra.mxu0 0.0
    %825 = vmatprep.subr.mxu0 0.0
    %826 = vmatpush2.msra.mxu0 0.0
    %827 = vmatprep.subr.mxu0 0.0
    %828 = vmatpush2.msra.mxu0 0.0
    %829 = vmatprep.subr.mxu0 0.0
    %830 = vmatpush2.msra.mxu0 0.0
    %831 = vmatprep.subr.mxu0 0.0
    %832 = vmatpush2.msra.mxu0 0.0
    %833 = vmatprep.subr.mxu0 0.0
    %834 = vmatpush2.msra.mxu0 0.0
    %835 = vmatprep.mubr.f32.mxu0 0.0
    %836 = vmatmul.mubr.f32.gmra.mxu0 %v769
    %v837 = vpop.f32.mrf.mxu0
    %v838 = vadd.f32 0.0, %v837
    %v839 = vpop.f32.mrf.mxu0
    %840 = vdwg.mxu0
    %v841 = vadd.f32 %v159, %v838
    %v842 = vxor.u32 %v841, 2147483648
    %v843 = vmul.f32 %v842, 1.442695
    %v844 = vpow.pop %v843
    %v845 = vadd.f32 %v844, 1.0
    %v846 = vrcp.pop %v845
    %v847 = vmul.f32 1.0, %v846
    %v848 = vtanh.pop %v841
    %v849 = vmul.f32 %v847, %v759
    %851 = vrot.lane.b32.xlu0 %v848, 64
    %v852 = vpop.permute.xlu0 %851
    %v854 = vmul.f32 %v847, %v852
    %856 = vrot.lane.b32.xlu0 %v854, 32
    %v857 = vpop.permute.xlu0 %856
    %v859 = vadd.f32 %v849, %v857
    %v860 = vtanh.pop %v859
    %862 = vrot.lane.b32.xlu0 %v860, 64
    %v863 = vpop.permute.xlu0 %862
    %v865 = vmul.f32 %v847, %v863
    %867 = vrot.lane.b32.xlu0 %v865, 32
    %v868 = vpop.permute.xlu0 %867
    %v869 = vsel %vm167, %v868, 0
    %871 = vmatprep.subr.mxu0 0.0
    %872 = vmatpush1.msra.mxu0 0.0
    %873 = vmatprep.subr.mxu0 0.0
    %874 = vmatpush1.msra.mxu0 0.0
    %875 = vmatprep.subr.mxu0 0.0
    %876 = vmatpush1.msra.mxu0 0.0
    %877 = vmatprep.subr.mxu0 0.0
    %878 = vmatpush1.msra.mxu0 0.0
    %879 = vmatprep.subr.mxu0 0.0
    %880 = vmatpush1.msra.mxu0 0.0
    %881 = vmatprep.subr.mxu0 0.0
    %882 = vmatpush1.msra.mxu0 0.0
    %883 = vmatprep.subr.mxu0 0.0
    %884 = vmatpush1.msra.mxu0 0.0
    %885 = vmatprep.subr.mxu0 0.0
    %886 = vmatpush1.msra.mxu0 0.0
    %887 = vmatprep.subr.mxu0 0.0
    %888 = vmatpush1.msra.mxu0 0.0
    %889 = vmatprep.subr.mxu0 0.0
    %890 = vmatpush1.msra.mxu0 0.0
    %891 = vmatprep.subr.mxu0 0.0
    %892 = vmatpush1.msra.mxu0 0.0
    %893 = vmatprep.subr.mxu0 0.0
    %894 = vmatpush1.msra.mxu0 0.0
    %895 = vmatprep.subr.mxu0 0.0
    %896 = vmatpush1.msra.mxu0 %v19
    %897 = vmatprep.subr.mxu0 0.0
    %898 = vmatpush1.msra.mxu0 %v18
    %899 = vmatprep.subr.mxu0 0.0
    %900 = vmatpush1.msra.mxu0 %v17
    %901 = vmatprep.subr.mxu0 0.0
    %902 = vmatpush1.msra.mxu0 %v16
    %903 = vmatprep.subr.mxu0 0.0
    %904 = vmatpush2.msra.mxu0 0.0
    %905 = vmatprep.subr.mxu0 0.0
    %906 = vmatpush2.msra.mxu0 0.0
    %907 = vmatprep.subr.mxu0 0.0
    %908 = vmatpush2.msra.mxu0 0.0
    %909 = vmatprep.subr.mxu0 0.0
    %910 = vmatpush2.msra.mxu0 0.0
    %911 = vmatprep.subr.mxu0 0.0
    %912 = vmatpush2.msra.mxu0 0.0
    %913 = vmatprep.subr.mxu0 0.0
    %914 = vmatpush2.msra.mxu0 0.0
    %915 = vmatprep.subr.mxu0 0.0
    %916 = vmatpush2.msra.mxu0 0.0
    %917 = vmatprep.subr.mxu0 0.0
    %918 = vmatpush2.msra.mxu0 0.0
    %919 = vmatprep.subr.mxu0 0.0
    %920 = vmatpush2.msra.mxu0 0.0
    %921 = vmatprep.subr.mxu0 0.0
    %922 = vmatpush2.msra.mxu0 0.0
    %923 = vmatprep.subr.mxu0 0.0
    %924 = vmatpush2.msra.mxu0 0.0
    %925 = vmatprep.subr.mxu0 0.0
    %926 = vmatpush2.msra.mxu0 0.0
    %927 = vmatprep.subr.mxu0 0.0
    %928 = vmatpush2.msra.mxu0 0.0
    %929 = vmatprep.subr.mxu0 0.0
    %930 = vmatpush2.msra.mxu0 0.0
    %931 = vmatprep.subr.mxu0 0.0
    %932 = vmatpush2.msra.mxu0 0.0
    %933 = vmatprep.subr.mxu0 0.0
    %934 = vmatpush2.msra.mxu0 0.0
    %935 = vmatprep.mubr.f32.mxu0 0.0
    %936 = vmatmul.mubr.f32.gmra.mxu0 %v869
    %v937 = vpop.f32.mrf.mxu0
    %v938 = vadd.f32 0.0, %v937
    %v939 = vpop.f32.mrf.mxu0
    %940 = vdwg.mxu0
    %v941 = vadd.f32 %v164, %v938
    %v942 = vxor.u32 %v941, 2147483648
    %v943 = vmul.f32 %v942, 1.442695
    %v944 = vpow.pop %v943
    %v945 = vadd.f32 %v944, 1.0
    %v946 = vrcp.pop %v945
    %v947 = vmul.f32 1.0, %v946
    %v948 = vtanh.pop %v941
    %v949 = vmul.f32 %v947, %v859
    %951 = vrot.lane.b32.xlu0 %v948, 64
    %v952 = vpop.permute.xlu0 %951
    %v954 = vmul.f32 %v947, %v952
    %956 = vrot.lane.b32.xlu0 %v954, 32
    %v957 = vpop.permute.xlu0 %956
    %v959 = vadd.f32 %v949, %v957
    %v960 = vtanh.pop %v959
    %962 = vrot.lane.b32.xlu0 %v960, 64
    %v963 = vpop.permute.xlu0 %962
    %v965 = vmul.f32 %v947, %v963
    %v966 = vld [vmem:[%s2] sm:$0x1]
    %v967 = vlaneseq
    %v968 = vshrl.u32 %v967, 7
    %v969 = vsub.s32 0, %v968
    %v970 = vrot.slane %v966, %v969
    %972 = vrot.lane.b32.xlu0 %v970, 96
    %v973 = vpop.permute.xlu0 %972
    %v975 = vmul.f32 %v265, %v973
    %v976 = vmul.f32 %v365, %v973
    %v977 = vmul.f32 %v465, %v973
    %v978 = vmul.f32 %v565, %v973
    %v979 = vmul.f32 %v665, %v973
    %v980 = vmul.f32 %v765, %v973
    %v981 = vmul.f32 %v865, %v973
    %v982 = vmul.f32 %v965, %v973
    %991 = vrot.lane.b32.xlu0 %v975, 32
    %v992 = vpop.permute.xlu0 %991
    %993 = vrot.lane.b32.xlu0 %v976, 32
    %v994 = vpop.permute.xlu0 %993
    %995 = vrot.lane.b32.xlu0 %v977, 32
    %v996 = vpop.permute.xlu0 %995
    %997 = vrot.lane.b32.xlu0 %v978, 32
    %v998 = vpop.permute.xlu0 %997
    %999 = vrot.lane.b32.xlu0 %v979, 32
    %v1000 = vpop.permute.xlu0 %999
    %1001 = vrot.lane.b32.xlu0 %v980, 32
    %v1002 = vpop.permute.xlu0 %1001
    %1003 = vrot.lane.b32.xlu0 %v981, 32
    %v1004 = vpop.permute.xlu0 %1003
    %1005 = vrot.lane.b32.xlu0 %v982, 32
    %v1006 = vpop.permute.xlu0 %1005
    %v1015 = vsel %vm167, %v992, 0.0
    %1016 = vadd.xlane.f32.xlu0 %v1015
    %v1017 = vpop.xlane.xlu0 %1016
    %v1018 = vsel %vm167, %v994, 0.0
    %1019 = vadd.xlane.f32.xlu0 %v1018
    %v1020 = vpop.xlane.xlu0 %1019
    %v1021 = vsel %vm167, %v996, 0.0
    %1022 = vadd.xlane.f32.xlu0 %v1021
    %v1023 = vpop.xlane.xlu0 %1022
    %v1024 = vsel %vm167, %v998, 0.0
    %1025 = vadd.xlane.f32.xlu0 %v1024
    %v1026 = vpop.xlane.xlu0 %1025
    %v1027 = vsel %vm167, %v1000, 0.0
    %1028 = vadd.xlane.f32.xlu0 %v1027
    %v1029 = vpop.xlane.xlu0 %1028
    %v1030 = vsel %vm167, %v1002, 0.0
    %1031 = vadd.xlane.f32.xlu0 %v1030
    %v1032 = vpop.xlane.xlu0 %1031
    %v1033 = vsel %vm167, %v1004, 0.0
    %1034 = vadd.xlane.f32.xlu0 %v1033
    %v1035 = vpop.xlane.xlu0 %1034
    %v1036 = vsel %vm167, %v1006, 0.0
    %1037 = vadd.xlane.f32.xlu0 %v1036
    %v1038 = vpop.xlane.xlu0 %1037
    %v1039 = vmax.f32 %v1017, %v1029
    %v1040 = vmax.f32 %v1020, %v1032
    %v1041 = vmax.f32 %v1023, %v1035
    %v1042 = vmax.f32 %v1026, %v1038
    %v1043 = vmax.f32 %v1039, %v1040
    %v1044 = vmax.f32 %v1041, %v1042
    %v1045 = vmax.f32 %v1043, %v1044
    %v1046 = vsub.f32 %v1017, %v1045
    %v1047 = vsub.f32 %v1020, %v1045
    %v1048 = vsub.f32 %v1023, %v1045
    %v1049 = vsub.f32 %v1026, %v1045
    %v1050 = vsub.f32 %v1029, %v1045
    %v1051 = vsub.f32 %v1032, %v1045
    %v1052 = vsub.f32 %v1035, %v1045
    %v1053 = vsub.f32 %v1038, %v1045
    %v1054 = vmul.f32 %v1046, 1.442695
    %v1055 = vpow.pop %v1054
    %v1056 = vmul.f32 %v1047, 1.442695
    %v1057 = vpow.pop %v1056
    %v1058 = vmul.f32 %v1048, 1.442695
    %v1059 = vpow.pop %v1058
    %v1060 = vmul.f32 %v1049, 1.442695
    %v1061 = vpow.pop %v1060
    %v1062 = vmul.f32 %v1050, 1.442695
    %v1063 = vpow.pop %v1062
    %v1064 = vmul.f32 %v1051, 1.442695
    %v1065 = vpow.pop %v1064
    %v1066 = vmul.f32 %v1052, 1.442695
    %v1067 = vpow.pop %v1066
    %v1068 = vmul.f32 %v1053, 1.442695
    %v1069 = vpow.pop %v1068
    %v1070 = vadd.f32 %v1055, %v1057
    %v1071 = vadd.f32 %v1070, %v1059
    %v1072 = vadd.f32 %v1071, %v1061
    %v1073 = vadd.f32 %v1072, %v1063
    %v1074 = vadd.f32 %v1073, %v1065
    %v1075 = vadd.f32 %v1074, %v1067
    %v1076 = vadd.f32 %v1075, %v1069
    %v1077 = vmul.f32 %v1055, %v265
    %v1078 = vmul.f32 %v1057, %v365
    %v1079 = vmul.f32 %v1059, %v465
    %v1080 = vmul.f32 %v1061, %v565
    %v1081 = vmul.f32 %v1063, %v665
    %v1082 = vmul.f32 %v1065, %v765
    %v1083 = vmul.f32 %v1067, %v865
    %v1084 = vmul.f32 %v1069, %v965
    %vm1085 = vcmask 1048320
    %v1086 = vsel %vm1085, %v1077, 0.0
    %v1087 = vsel %vm1085, %v1078, 0.0
    %v1088 = vadd.f32 %v1086, %v1087
    %v1089 = vsel %vm1085, %v1079, 0.0
    %v1090 = vadd.f32 %v1088, %v1089
    %v1091 = vsel %vm1085, %v1080, 0.0
    %v1092 = vadd.f32 %v1090, %v1091
    %v1093 = vsel %vm1085, %v1081, 0.0
    %v1094 = vadd.f32 %v1092, %v1093
    %v1095 = vsel %vm1085, %v1082, 0.0
    %v1096 = vadd.f32 %v1094, %v1095
    %v1097 = vsel %vm1085, %v1083, 0.0
    %v1098 = vadd.f32 %v1096, %v1097
    %v1099 = vsel %vm1085, %v1084, 0.0
    %v1100 = vadd.f32 %v1098, %v1099
    %v1101 = vrcp.pop %v1076
    %v1102 = vmul.f32 %v1100, %v1101
    %v1103 = vld [vmem:[%s2 + $0x8] sm:$0xff]
    %v1104 = vld [vmem:[%s2 + $0x10] sm:$0xff]
    %v1105 = vld [vmem:[%s2 + $0x18] sm:$0xff]
    %v1106 = vld [vmem:[%s2 + $0x20] sm:$0xff]
    %v1107 = vld [vmem:[%s2 + $0x28] sm:$0x1]
    %v1108 = vld [vmem:[%s2 + $0x30] sm:$0xff]
    %v1109 = vld [vmem:[%s2 + $0x38] sm:$0xff]
    %v1110 = vld [vmem:[%s2 + $0x40] sm:$0xff]
    %v1111 = vld [vmem:[%s2 + $0x48] sm:$0xff]
    %v1112 = vld [vmem:[%s2 + $0x50] sm:$0xff]
    %v1113 = vld [vmem:[%s2 + $0x58] sm:$0xff]
    %v1114 = vld [vmem:[%s2 + $0x60] sm:$0xff]
    %v1115 = vld [vmem:[%s2 + $0x68] sm:$0xff]
    %v1116 = vld [vmem:[%s2 + $0x70] sm:$0x1]
    %v1117 = vld [vmem:[%s2 + $0x78] sm:$0xff]
    %v1118 = vld [vmem:[%s2 + $0x80] sm:$0xff]
    %v1119 = vld [vmem:[%s2 + $0x88] sm:$0xff]
    %v1120 = vld [vmem:[%s2 + $0x90] sm:$0xff]
    %v1121 = vld [vmem:[%s2 + $0x98] sm:$0x1]
    %v1122 = vlaneseq
    %v1123 = vshrl.u32 %v1122, 7
    %v1124 = vsub.s32 0, %v1123
    %v1125 = vrot.slane %v1107, %v1124
    %1127 = vrot.lane.b32.xlu0 %v1102, 32
    %v1128 = vpop.permute.xlu0 %1127
    %v1129 = vsel %vm167, %v1128, 0
    %1131 = vmatprep.subr.mxu0 0.0
    %1132 = vmatpush1.msra.mxu0 0.0
    %1133 = vmatprep.subr.mxu0 0.0
    %1134 = vmatpush1.msra.mxu0 0.0
    %1135 = vmatprep.subr.mxu0 0.0
    %1136 = vmatpush1.msra.mxu0 0.0
    %1137 = vmatprep.subr.mxu0 0.0
    %1138 = vmatpush1.msra.mxu0 0.0
    %1139 = vmatprep.subr.mxu0 0.0
    %1140 = vmatpush1.msra.mxu0 0.0
    %1141 = vmatprep.subr.mxu0 0.0
    %1142 = vmatpush1.msra.mxu0 0.0
    %1143 = vmatprep.subr.mxu0 0.0
    %1144 = vmatpush1.msra.mxu0 0.0
    %1145 = vmatprep.subr.mxu0 0.0
    %1146 = vmatpush1.msra.mxu0 0.0
    %1147 = vmatprep.subr.mxu0 0.0
    %1148 = vmatpush1.msra.mxu0 0.0
    %1149 = vmatprep.subr.mxu0 0.0
    %1150 = vmatpush1.msra.mxu0 0.0
    %1151 = vmatprep.subr.mxu0 0.0
    %1152 = vmatpush1.msra.mxu0 0.0
    %1153 = vmatprep.subr.mxu0 0.0
    %1154 = vmatpush1.msra.mxu0 0.0
    %1155 = vmatprep.subr.mxu0 0.0
    %1156 = vmatpush1.msra.mxu0 %v1106
    %1157 = vmatprep.subr.mxu0 0.0
    %1158 = vmatpush1.msra.mxu0 %v1105
    %1159 = vmatprep.subr.mxu0 0.0
    %1160 = vmatpush1.msra.mxu0 %v1104
    %1161 = vmatprep.subr.mxu0 0.0
    %1162 = vmatpush1.msra.mxu0 %v1103
    %1163 = vmatprep.subr.mxu0 0.0
    %1164 = vmatpush2.msra.mxu0 0.0
    %1165 = vmatprep.subr.mxu0 0.0
    %1166 = vmatpush2.msra.mxu0 0.0
    %1167 = vmatprep.subr.mxu0 0.0
    %1168 = vmatpush2.msra.mxu0 0.0
    %1169 = vmatprep.subr.mxu0 0.0
    %1170 = vmatpush2.msra.mxu0 0.0
    %1171 = vmatprep.subr.mxu0 0.0
    %1172 = vmatpush2.msra.mxu0 0.0
    %1173 = vmatprep.subr.mxu0 0.0
    %1174 = vmatpush2.msra.mxu0 0.0
    %1175 = vmatprep.subr.mxu0 0.0
    %1176 = vmatpush2.msra.mxu0 0.0
    %1177 = vmatprep.subr.mxu0 0.0
    %1178 = vmatpush2.msra.mxu0 0.0
    %1179 = vmatprep.subr.mxu0 0.0
    %1180 = vmatpush2.msra.mxu0 0.0
    %1181 = vmatprep.subr.mxu0 0.0
    %1182 = vmatpush2.msra.mxu0 0.0
    %1183 = vmatprep.subr.mxu0 0.0
    %1184 = vmatpush2.msra.mxu0 0.0
    %1185 = vmatprep.subr.mxu0 0.0
    %1186 = vmatpush2.msra.mxu0 0.0
    %1187 = vmatprep.subr.mxu0 0.0
    %1188 = vmatpush2.msra.mxu0 0.0
    %1189 = vmatprep.subr.mxu0 0.0
    %1190 = vmatpush2.msra.mxu0 0.0
    %1191 = vmatprep.subr.mxu0 0.0
    %1192 = vmatpush2.msra.mxu0 0.0
    %1193 = vmatprep.subr.mxu0 0.0
    %1194 = vmatpush2.msra.mxu0 0.0
    %1195 = vmatprep.mubr.f32.mxu0 0.0
    %1196 = vmatmul.mubr.f32.gmra.mxu0 %v1129
    %v1197 = vpop.f32.mrf.mxu0
    %v1198 = vadd.f32 %v1125, %v1197
    %v1199 = vpop.f32.mrf.mxu0
    %1200 = vdwg.mxu0
    %v1201 = vmax.f32 %v1198, 0.0
    %v1202 = vlaneseq
    %v1203 = vshrl.u32 %v1202, 7
    %v1204 = vsub.s32 0, %v1203
    %v1205 = vrot.slane %v1116, %v1204
    %vm1206 = vcmask 523264
    %v1208 = vsel %vm1206, %v1201, 0
    %1210 = vmatprep.subr.mxu0 0.0
    %1211 = vmatpush1.msra.mxu0 0.0
    %1212 = vmatprep.subr.mxu0 0.0
    %1213 = vmatpush1.msra.mxu0 0.0
    %1214 = vmatprep.subr.mxu0 0.0
    %1215 = vmatpush1.msra.mxu0 0.0
    %1216 = vmatprep.subr.mxu0 0.0
    %1217 = vmatpush1.msra.mxu0 0.0
    %1218 = vmatprep.subr.mxu0 0.0
    %1219 = vmatpush1.msra.mxu0 0.0
    %1220 = vmatprep.subr.mxu0 0.0
    %1221 = vmatpush1.msra.mxu0 0.0
    %1222 = vmatprep.subr.mxu0 0.0
    %1223 = vmatpush1.msra.mxu0 0.0
    %1224 = vmatprep.subr.mxu0 0.0
    %1225 = vmatpush1.msra.mxu0 0.0
    %1226 = vmatprep.subr.mxu0 0.0
    %1227 = vmatpush1.msra.mxu0 %v1115
    %1228 = vmatprep.subr.mxu0 0.0
    %1229 = vmatpush1.msra.mxu0 %v1114
    %1230 = vmatprep.subr.mxu0 0.0
    %1231 = vmatpush1.msra.mxu0 %v1113
    %1232 = vmatprep.subr.mxu0 0.0
    %1233 = vmatpush1.msra.mxu0 %v1112
    %1234 = vmatprep.subr.mxu0 0.0
    %1235 = vmatpush1.msra.mxu0 %v1111
    %1236 = vmatprep.subr.mxu0 0.0
    %1237 = vmatpush1.msra.mxu0 %v1110
    %1238 = vmatprep.subr.mxu0 0.0
    %1239 = vmatpush1.msra.mxu0 %v1109
    %1240 = vmatprep.subr.mxu0 0.0
    %1241 = vmatpush1.msra.mxu0 %v1108
    %1242 = vmatprep.subr.mxu0 0.0
    %1243 = vmatpush2.msra.mxu0 0.0
    %1244 = vmatprep.subr.mxu0 0.0
    %1245 = vmatpush2.msra.mxu0 0.0
    %1246 = vmatprep.subr.mxu0 0.0
    %1247 = vmatpush2.msra.mxu0 0.0
    %1248 = vmatprep.subr.mxu0 0.0
    %1249 = vmatpush2.msra.mxu0 0.0
    %1250 = vmatprep.subr.mxu0 0.0
    %1251 = vmatpush2.msra.mxu0 0.0
    %1252 = vmatprep.subr.mxu0 0.0
    %1253 = vmatpush2.msra.mxu0 0.0
    %1254 = vmatprep.subr.mxu0 0.0
    %1255 = vmatpush2.msra.mxu0 0.0
    %1256 = vmatprep.subr.mxu0 0.0
    %1257 = vmatpush2.msra.mxu0 0.0
    %1258 = vmatprep.subr.mxu0 0.0
    %1259 = vmatpush2.msra.mxu0 0.0
    %1260 = vmatprep.subr.mxu0 0.0
    %1261 = vmatpush2.msra.mxu0 0.0
    %1262 = vmatprep.subr.mxu0 0.0
    %1263 = vmatpush2.msra.mxu0 0.0
    %1264 = vmatprep.subr.mxu0 0.0
    %1265 = vmatpush2.msra.mxu0 0.0
    %1266 = vmatprep.subr.mxu0 0.0
    %1267 = vmatpush2.msra.mxu0 0.0
    %1268 = vmatprep.subr.mxu0 0.0
    %1269 = vmatpush2.msra.mxu0 0.0
    %1270 = vmatprep.subr.mxu0 0.0
    %1271 = vmatpush2.msra.mxu0 0.0
    %1272 = vmatprep.subr.mxu0 0.0
    %1273 = vmatpush2.msra.mxu0 0.0
    %1274 = vmatprep.mubr.f32.mxu0 0.0
    %1275 = vmatmul.mubr.f32.gmra.mxu0 %v1208
    %v1276 = vpop.f32.mrf.mxu0
    %v1277 = vadd.f32 %v1205, %v1276
    %v1278 = vpop.f32.mrf.mxu0
    %1279 = vdwg.mxu0
    %v1280 = vlaneseq
    %v1281 = vshrl.u32 %v1280, 7
    %v1282 = vsub.s32 0, %v1281
    %v1283 = vrot.slane %v1121, %v1282
    %v1285 = vsel %vm167, %v1277, 0
    %1287 = vmatprep.subr.mxu0 0.0
    %1288 = vmatpush1.msra.mxu0 0.0
    %1289 = vmatprep.subr.mxu0 0.0
    %1290 = vmatpush1.msra.mxu0 0.0
    %1291 = vmatprep.subr.mxu0 0.0
    %1292 = vmatpush1.msra.mxu0 0.0
    %1293 = vmatprep.subr.mxu0 0.0
    %1294 = vmatpush1.msra.mxu0 0.0
    %1295 = vmatprep.subr.mxu0 0.0
    %1296 = vmatpush1.msra.mxu0 0.0
    %1297 = vmatprep.subr.mxu0 0.0
    %1298 = vmatpush1.msra.mxu0 0.0
    %1299 = vmatprep.subr.mxu0 0.0
    %1300 = vmatpush1.msra.mxu0 0.0
    %1301 = vmatprep.subr.mxu0 0.0
    %1302 = vmatpush1.msra.mxu0 0.0
    %1303 = vmatprep.subr.mxu0 0.0
    %1304 = vmatpush1.msra.mxu0 0.0
    %1305 = vmatprep.subr.mxu0 0.0
    %1306 = vmatpush1.msra.mxu0 0.0
    %1307 = vmatprep.subr.mxu0 0.0
    %1308 = vmatpush1.msra.mxu0 0.0
    %1309 = vmatprep.subr.mxu0 0.0
    %1310 = vmatpush1.msra.mxu0 0.0
    %1311 = vmatprep.subr.mxu0 0.0
    %1312 = vmatpush1.msra.mxu0 %v1120
    %1313 = vmatprep.subr.mxu0 0.0
    %1314 = vmatpush1.msra.mxu0 %v1119
    %1315 = vmatprep.subr.mxu0 0.0
    %1316 = vmatpush1.msra.mxu0 %v1118
    %1317 = vmatprep.subr.mxu0 0.0
    %1318 = vmatpush1.msra.mxu0 %v1117
    %1319 = vmatprep.subr.mxu0 0.0
    %1320 = vmatpush2.msra.mxu0 0.0
    %1321 = vmatprep.subr.mxu0 0.0
    %1322 = vmatpush2.msra.mxu0 0.0
    %1323 = vmatprep.subr.mxu0 0.0
    %1324 = vmatpush2.msra.mxu0 0.0
    %1325 = vmatprep.subr.mxu0 0.0
    %1326 = vmatpush2.msra.mxu0 0.0
    %1327 = vmatprep.subr.mxu0 0.0
    %1328 = vmatpush2.msra.mxu0 0.0
    %1329 = vmatprep.subr.mxu0 0.0
    %1330 = vmatpush2.msra.mxu0 0.0
    %1331 = vmatprep.subr.mxu0 0.0
    %1332 = vmatpush2.msra.mxu0 0.0
    %1333 = vmatprep.subr.mxu0 0.0
    %1334 = vmatpush2.msra.mxu0 0.0
    %1335 = vmatprep.subr.mxu0 0.0
    %1336 = vmatpush2.msra.mxu0 0.0
    %1337 = vmatprep.subr.mxu0 0.0
    %1338 = vmatpush2.msra.mxu0 0.0
    %1339 = vmatprep.subr.mxu0 0.0
    %1340 = vmatpush2.msra.mxu0 0.0
    %1341 = vmatprep.subr.mxu0 0.0
    %1342 = vmatpush2.msra.mxu0 0.0
    %1343 = vmatprep.subr.mxu0 0.0
    %1344 = vmatpush2.msra.mxu0 0.0
    %1345 = vmatprep.subr.mxu0 0.0
    %1346 = vmatpush2.msra.mxu0 0.0
    %1347 = vmatprep.subr.mxu0 0.0
    %1348 = vmatpush2.msra.mxu0 0.0
    %1349 = vmatprep.subr.mxu0 0.0
    %1350 = vmatpush2.msra.mxu0 0.0
    %1351 = vmatprep.mubr.f32.mxu0 0.0
    %1352 = vmatmul.mubr.f32.gmra.mxu0 %v1285
    %v1353 = vpop.f32.mrf.mxu0
    %v1354 = vadd.f32 %v1283, %v1353
    %v1355 = vpop.f32.mrf.mxu0
    %1356 = vdwg.mxu0
    %vm1357 = vcmask 64512
    %1358 = vst.msk [vmem:[#allocation2] sm:$0xff] %vm1357, %v1354
    // Predicated region
    $region14: #{tpu_custom_call.1} parent=1 // pred_check
      _
    $region15: #{tpu_custom_call.1} parent=1 // pred_check_branch
      %1360 = sbr.rel (0) target = $region17
    $region16: #{tpu_custom_call.1} parent=1 // pred_region
      %s1362 = ssub.s32 128, 128
      %1363 = vsyncadd [#allocation3], %s1362
      %s1365 = sshll.u32 [#allocation2], 4
      %s1366 = int_to_ptr.vmem [resolvable:$true] %s1365
      %1368 = dma.vmem_to_hbm [thread:$0]  %s1366, 128, %s3, [#allocation3]
    $region17: #{tpu_custom_call.1} parent=1 // pred_fallthru
      _
    // Predicated region
    $region18: #{tpu_custom_call.1} parent=1 // pred_check
      _
    $region19: #{tpu_custom_call.1} parent=1 // pred_check_branch
      %1370 = sbr.rel (0) target = $region21
    $region20: #{tpu_custom_call.1} parent=1 // pred_region
      %1371 = dma.done [#allocation3], 128
    $region21: #{tpu_custom_call.1} parent=1 // pred_fallthru
      _
    %1372 = vsyncpa [#allocation3], 1

</llo_original>
